<compile_context>
chip_gen: v6e
topology: v6e:2x2x1
jax: 0.10.0
libtpu: 0.0.40
codegen_flags: <defaults>
</compile_context>

<pallas_src>
import functools

import jax
import jax.numpy as jnp
from jax.experimental import pallas as pl
from jax.experimental.pallas import tpu as pltpu


# --------------------------- generation-aware limits -------------------------- #
def _detect_vmem_capacity():
    try:
        info = pltpu.get_tpu_info()
        return int(getattr(info, "vmem_capacity_bytes", 64 * 1024 * 1024))
    except Exception:                      # no TPU info available -> conservative
        return 64 * 1024 * 1024


_VMEM_CAP = _detect_vmem_capacity()
if _VMEM_CAP >= 128 * 1024 * 1024:         # v5e / v6e: 128 MiB physical VMEM
    _VMEM_LIMIT = 100 * 1024 * 1024
    _MAX_TILE_M = 1024
else:                                      # v7x: 64 MiB per TensorCore
    _VMEM_LIMIT = 48 * 1024 * 1024
    _MAX_TILE_M = 512


# ------------------------------- Pallas kernels ------------------------------- #
def _conv_stats_kernel(*refs, n_branches):
    """Pass 1 (fused). Per branch b:
         y_b = x_b @ w_b                   (MXU, f32 accumulate) -> streamed bf16
         sum_b / sumsq_b += column sums    (BN batch statistics) -> resident (8,C)
    Grid = (core split "parallel", M row tiles "arbitrary")."""
    in_refs = refs[:2 * n_branches]
    out_refs = refs[2 * n_branches:]

    @pl.when(pl.program_id(1) == 0)
    def _init():
        for b in range(n_branches):
            out_refs[3 * b + 1][...] = jnp.zeros_like(out_refs[3 * b + 1])
            out_refs[3 * b + 2][...] = jnp.zeros_like(out_refs[3 * b + 2])

    for b in range(n_branches):
        acc = jnp.dot(in_refs[2 * b][...], in_refs[2 * b + 1][...],
                      preferred_element_type=jnp.float32)            # MXU, f32 acc
        out_refs[3 * b][...] = acc.astype(out_refs[3 * b].dtype)     # conv result
        # (1, C) sums broadcast into the (8, C) accumulator rows (all rows equal;
        # block kept 8 rows tall to satisfy the (8, 128) sublane tiling rule).
        out_refs[3 * b + 1][...] += jnp.sum(acc, axis=0, keepdims=True)
        out_refs[3 * b + 2][...] += jnp.sum(acc * acc, axis=0, keepdims=True)


def _epilogue_kernel(*refs, n_branches, has_residual, relu):
    """Pass 2 (pure VPU): out = sum_b (y_b * scale_b + shift_b) [+ res] [ReLU]."""
    out_ref = refs[-1]
    pos = 0
    y = None
    for _ in range(n_branches):
        y_ref, scale_ref, shift_ref = refs[pos:pos + 3]
        pos += 3
        t = y_ref[...].astype(jnp.float32) * scale_ref[...] + shift_ref[...]
        y = t if y is None else y + t
    if has_residual:
        y = y + refs[pos][...].astype(jnp.float32)
    if relu:
        y = jnp.maximum(y, 0.0)
    out_ref[...] = y.astype(out_ref.dtype)


# ------------------------------- pallas_call wrappers ------------------------- #
def _round_up(n, m):
    return ((n + m - 1) // m) * m


def _plan_tiles(m, row_bytes):
    """Pick (Mp, TM, n_split): target the largest row tile and pad M up to a
    multiple of it (never degrade to tiny tiles for awkward M)."""
    max_tile = _MAX_TILE_M
    # Keep the double-buffered streamed working set comfortably inside VMEM
    # (only matters for very wide K, e.g. 512-channel ResNet stages).
    while max_tile > 128 and 2 * max_tile * row_bytes > _VMEM_LIMIT // 2:
        max_tile //= 2
    if m <= max_tile:
        mp = _round_up(m, 16)              # bf16 sublane packing
        return mp, mp, 1
    tm = max_tile
    n_split = 2 if m >= 2 * tm else 1      # leading "parallel" axis (v7x megacore)
    return _round_up(m, n_split * tm), tm, n_split


def _pad_rows(a, mp):
    m = a.shape[0]
    return a if m == mp else jnp.pad(a, ((0, mp - m), (0, 0)))


def _conv_with_stats(branches, *, mp, tm, n_split, c):
    """branches: [(patches (Mp, K) bf16, weights (K, C) bf16), ...]
    Returns [(conv (Mp, C) bf16, sum (8*n_split, C) f32, sumsq (...) f32), ...]."""
    nb = len(branches)
    steps = mp // (n_split * tm)

    def stream_map(s, i, steps=steps):
        return (s * steps + i, 0)

    def const_map(s, i):                    # VMEM-resident across the whole grid
        return (0, 0)

    def stats_map(s, i):                    # one accumulator block per core split
        return (s, 0)

    inputs, in_specs = [], []
    for p, w in branches:
        k = p.shape[1]
        inputs += [p, w]
        # NOTE: the resident weight spec would ideally use pipeline_mode=
        # pl.Buffered(1) to drop its redundant second buffer on v7x; left off
        # for portability (benefit only matters for very large weights).
        in_specs += [pl.BlockSpec((tm, k), stream_map),
                     pl.BlockSpec((k, c), const_map)]

    out_shape, out_specs = [], []
    for _ in range(nb):
        out_shape += [jax.ShapeDtypeStruct((mp, c), jnp.bfloat16),
                      jax.ShapeDtypeStruct((8 * n_split, c), jnp.float32),
                      jax.ShapeDtypeStruct((8 * n_split, c), jnp.float32)]
        out_specs += [pl.BlockSpec((tm, c), stream_map),
                      pl.BlockSpec((8, c), stats_map),
                      pl.BlockSpec((8, c), stats_map)]

    outs = pl.pallas_call(
        functools.partial(_conv_stats_kernel, n_branches=nb),
        out_shape=tuple(out_shape),
        grid=(n_split, steps),
        in_specs=in_specs,
        out_specs=tuple(out_specs),
        compiler_params=pltpu.CompilerParams(
            dimension_semantics=("parallel", "arbitrary"),
            vmem_limit_bytes=_VMEM_LIMIT),
    )(*inputs)
    return [(outs[3 * b], outs[3 * b + 1], outs[3 * b + 2]) for b in range(nb)]


def _affine_epilogue(branches, residual, *, mp, tm, c, relu, out_dtype):
    """branches: [(conv (Mp, C) bf16, scale (1, C) f32, shift (1, C) f32), ...];
    residual: optional (Mp, C) bf16.  Returns (Mp, C) out_dtype."""
    nb = len(branches)
    inputs, in_specs = [], []
    for y, scale, shift in branches:
        inputs += [y, scale, shift]
        in_specs += [pl.BlockSpec((tm, c), lambda i: (i, 0)),
                     pl.BlockSpec((1, c), lambda i: (0, 0)),
                     pl.BlockSpec((1, c), lambda i: (0, 0))]
    if residual is not None:
        inputs.append(residual)
        in_specs.append(pl.BlockSpec((tm, residual.shape[1]), lambda i: (i, 0)))
    return pl.pallas_call(
        functools.partial(_epilogue_kernel, n_branches=nb,
                          has_residual=residual is not None, relu=relu),
        out_shape=jax.ShapeDtypeStruct((mp, c), out_dtype),
        grid=(mp // tm,),
        in_specs=in_specs,
        out_specs=pl.BlockSpec((tm, c), lambda i: (i, 0)),
        compiler_params=pltpu.CompilerParams(
            dimension_semantics=("parallel",),
            vmem_limit_bytes=_VMEM_LIMIT),
    )(*inputs)


def _bn_scale_shift(s, ss, gamma, beta, m_true, eps):
    """Finalize training-mode BN stats into a per-channel affine (tiny glue).
    s / ss have 8 identical rows per core split; take one row per split."""
    s = jnp.sum(s[::8], axis=0, keepdims=True)        # (1, C)
    ss = jnp.sum(ss[::8], axis=0, keepdims=True)
    mean = s / m_true
    var = ss / m_true - mean * mean                   # biased var (train fwd)
    inv = jax.lax.rsqrt(var + eps)
    scale = gamma[None, :] * inv
    shift = beta[None, :] - mean * scale
    return scale, shift


# ---------------------------------- JAX glue ---------------------------------- #
def _im2col(x_nhwc, k, stride, pad):
    """(N*OH*OW, k*k*C) patches from NHWC input (rows ordered n, oh, ow)."""
    # TODO(synk): replace with in-kernel shifted matmuls (see header).
    N, H, W, C = x_nhwc.shape
    xp = jnp.pad(x_nhwc, ((0, 0), (pad, pad), (pad, pad), (0, 0)))
    OH = (H + 2 * pad - k) // stride + 1
    OW = (W + 2 * pad - k) // stride + 1
    cols = []
    for dy in range(k):
        for dx in range(k):
            cols.append(xp[:, dy:dy + stride * (OH - 1) + 1:stride,
                           dx:dx + stride * (OW - 1) + 1:stride, :])
    patches = jnp.concatenate(cols, axis=-1)           # (N, OH, OW, k*k*C)
    return patches.reshape(N * OH * OW, k * k * C), OH, OW


def _w_to_mat(w_oihw):
    """(Cout, Cin, kh, kw) -> (kh*kw*Cin, Cout), matching im2col ordering."""
    cout = w_oihw.shape[0]
    return jnp.transpose(w_oihw, (2, 3, 1, 0)).reshape(-1, cout)


def residual_block_forward(x_nchw, params, stride, eps=1e-5):
    x = jnp.transpose(x_nchw, (0, 2, 3, 1))            # NCHW -> NHWC
    N, H, W, cin = x.shape
    cout = params["w1"].shape[0]
    has_projection = (stride != 1) or (cin != cout)
    x_bf16 = x.astype(jnp.bfloat16)                    # bf16 MXU / streamed operands

    # ---------------- conv1 (3x3, stride, pad 1) + BN1 + ReLU ----------------- #
    p1, OH, OW = _im2col(x_bf16, 3, stride, 1)
    m = N * OH * OW
    row_bytes = 2 * (9 * max(cin, cout) + 4 * cout + 2 * cin)   # planning heuristic
    mp, tm, n_split = _plan_tiles(m, row_bytes)
    p1 = _pad_rows(p1, mp)                             # zero rows: stats unaffected
    w1 = _w_to_mat(params["w1"]).astype(jnp.bfloat16)

    (y1, s1, ss1), = _conv_with_stats([(p1, w1)], mp=mp, tm=tm,
                                      n_split=n_split, c=cout)
    sc1, sh1 = _bn_scale_shift(s1, ss1, params["g1"], params["b1"], m, eps)
    out1 = _affine_epilogue([(y1, sc1, sh1)], None, mp=mp, tm=tm, c=cout,
                            relu=True, out_dtype=jnp.bfloat16)  # bf16 intermediate

    # -------- conv2 (3x3, s=1, pad 1) + BN2, fused shortcut, add, ReLU -------- #
    p2, _, _ = _im2col(out1[:m].reshape(N, OH, OW, cout), 3, 1, 1)
    p2 = _pad_rows(p2, mp)
    w2 = _w_to_mat(params["w2"]).astype(jnp.bfloat16)

    if has_projection:
        # 1x1 strided shortcut conv + its BN fused as a second matmul branch,
        # so the shortcut tensor never round-trips HBM separately.
        xs = _pad_rows(x_bf16[:, ::stride, ::stride, :].reshape(m, cin), mp)
        ws = _w_to_mat(params["ws"]).astype(jnp.bfloat16)
        (y2, s2, ss2), (ysc, s_sc, ss_sc) = _conv_with_stats(
            [(p2, w2), (xs, ws)], mp=mp, tm=tm, n_split=n_split, c=cout)
        sc2, sh2 = _bn_scale_shift(s2, ss2, params["g2"], params["b2"], m, eps)
        scs, shs = _bn_scale_shift(s_sc, ss_sc, params["gs"], params["bs"], m, eps)
        out = _affine_epilogue([(y2, sc2, sh2), (ysc, scs, shs)], None,
                               mp=mp, tm=tm, c=cout, relu=True,
                               out_dtype=jnp.float32)
    else:
        # identity shortcut: stream the input rows as a bf16 residual operand.
        res = _pad_rows(x_bf16.reshape(m, cin), mp)
        (y2, s2, ss2), = _conv_with_stats([(p2, w2)], mp=mp, tm=tm,
                                          n_split=n_split, c=cout)
        sc2, sh2 = _bn_scale_shift(s2, ss2, params["g2"], params["b2"], m, eps)
        out = _affine_epilogue([(y2, sc2, sh2)], res, mp=mp, tm=tm, c=cout,
                               relu=True, out_dtype=jnp.float32)

    out = out[:m].reshape(N, OH, OW, cout)
    return jnp.transpose(out, (0, 3, 1, 2))            # NHWC -> NCHW


# ----------------------------- pure-JAX reference ------------------------------ #
def _ref_conv(x, w, stride, pad):
    return jax.lax.conv_general_dilated(
        x, w, (stride, stride), [(pad, pad), (pad, pad)],
        dimension_numbers=("NCHW", "OIHW", "NCHW"))


def _ref_bn(y, gamma, beta, eps=1e-5):
    mean = jnp.mean(y, axis=(0, 2, 3), keepdims=True)
    var = jnp.mean((y - mean) ** 2, axis=(0, 2, 3), keepdims=True)
    return (y - mean) / jnp.sqrt(var + eps) * gamma.reshape(1, -1, 1, 1) \
        + beta.reshape(1, -1, 1, 1)


def residual_block_reference(x, params, stride):
    out = jax.nn.relu(_ref_bn(_ref_conv(x, params["w1"], stride, 1),
                              params["g1"], params["b1"]))
    out = _ref_bn(_ref_conv(out, params["w2"], 1, 1), params["g2"], params["b2"])
    if stride != 1 or params["w1"].shape[1] != params["w1"].shape[0]:
        sc = _ref_bn(_ref_conv(x, params["ws"], stride, 0), params["gs"], params["bs"])
    else:
        sc = x
    return jax.nn.relu(out + sc)


# ------------------------------------ main ------------------------------------- #
if __name__ == "__main__":
    def make_params(key, cin, cout, projection):
        k = jax.random.split(key, 9)
        p = {
            "w1": jax.random.normal(k[0], (cout, cin, 3, 3), jnp.float32) * 0.2,
            "g1": 1.0 + 0.1 * jax.random.normal(k[1], (cout,), jnp.float32),
            "b1": 0.1 * jax.random.normal(k[2], (cout,), jnp.float32),
            "w2": jax.random.normal(k[3], (cout, cout, 3, 3), jnp.float32) * 0.2,
            "g2": 1.0 + 0.1 * jax.random.normal(k[4], (cout,), jnp.float32),
            "b2": 0.1 * jax.random.normal(k[5], (cout,), jnp.float32),
        }
        if projection:
            p["ws"] = jax.random.normal(k[6], (cout, cin, 1, 1), jnp.float32) * 0.2
            p["gs"] = 1.0 + 0.1 * jax.random.normal(k[7], (cout,), jnp.float32)
            p["bs"] = 0.1 * jax.random.normal(k[8], (cout,), jnp.float32)
        return p

    key = jax.random.PRNGKey(0)
    k_a, k_b, k_xa, k_xb = jax.random.split(key, 4)

    fwd = jax.jit(residual_block_forward, static_argnames=("stride", "eps"))

    # Case A: projection shortcut (stride=2, Cin != Cout).
    N, cin, cout, H, W, stride = 3, 4, 8, 16, 16, 2
    params_a = make_params(k_a, cin, cout, projection=True)
    x_a = jax.random.normal(k_xa, (N, cin, H, W), jnp.float32)
    out_a = jax.block_until_ready(fwd(x_a, params_a, stride=stride))
    assert out_a.shape == (N, cout, H // stride, W // stride), out_a.shape
    ref_a = jax.block_until_ready(residual_block_reference(x_a, params_a, stride))
    # bf16 MXU operands / bf16 conv intermediates with f32 stats & epilogue.
    assert jnp.allclose(out_a, ref_a, rtol=5e-2, atol=5e-2), \
        float(jnp.max(jnp.abs(out_a - ref_a)))

    # Case B: identity shortcut (stride=1, Cin == Cout).
    N, cin, cout, H, W, stride = 2, 8, 8, 16, 16, 1
    params_b = make_params(k_b, cin, cout, projection=False)
    x_b = jax.random.normal(k_xb, (N, cin, H, W), jnp.float32)
    out_b = jax.block_until_ready(fwd(x_b, params_b, stride=stride))
    assert out_b.shape == (N, cout, H, W), out_b.shape
    ref_b = jax.block_until_ready(residual_block_reference(x_b, params_b, stride))
    assert jnp.allclose(out_b, ref_b, rtol=5e-2, atol=5e-2), \
        float(jnp.max(jnp.abs(out_b - ref_b)))

    print("KERNEL_OK")
</pallas_src>

<mosaic_0001>
module attributes {stable_mosaic.version = 11 : i64} {
  func.func @_conv_stats_kernel(%arg0: i32, %arg1: i32, %arg2: memref<192x36xbf16, #tpu.memory_space<vmem>>, %arg3: memref<36x8xbf16, #tpu.memory_space<vmem>>, %arg4: memref<192x8xbf16, #tpu.memory_space<vmem>>, %arg5: memref<8x8xf32, #tpu.memory_space<vmem>>, %arg6: memref<8x8xf32, #tpu.memory_space<vmem>>) attributes {dimension_semantics = [#tpu.dimension_semantics<parallel>, #tpu.dimension_semantics<arbitrary>], iteration_bounds = array<i64: 1, 1>, scalar_prefetch = 0 : i64, scratch_operands = 0 : i64, tpu.core_type = #tpu.core_type<tc>, window_params = [{transform_indices = @transform_0, window_bounds = array<i64: 192, 36>}, {pipeline_mode = #tpu.pipeline_mode<synchronous>, transform_indices = @transform_1, window_bounds = array<i64: 36, 8>}, {transform_indices = @transform_2, window_bounds = array<i64: 192, 8>}, {transform_indices = @transform_3, window_bounds = array<i64: 8, 8>}, {transform_indices = @transform_4, window_bounds = array<i64: 8, 8>}]} {
    %c0_i32 = arith.constant 0 : i32
    %0 = arith.cmpi eq, %arg1, %c0_i32 : i32
    %1 = arith.extui %0 : i1 to i32
    %c0_i32_0 = arith.constant 0 : i32
    %2 = arith.cmpi ne, %1, %c0_i32_0 : i32
    scf.if %2 {
      %cst_16 = arith.constant 0.000000e+00 : f32
      %21 = vector.broadcast %cst_16 : f32 to vector<8x8xf32>
      %c0_17 = arith.constant 0 : index
      %c0_18 = arith.constant 0 : index
      %22 = vector.load %arg5[%c0_17, %c0_18] : memref<8x8xf32, #tpu.memory_space<vmem>>, vector<8x8xf32>
      tpu.vector_store %arg5[%c0_17, %c0_18], %21 {strides = array<i32>} : memref<8x8xf32, #tpu.memory_space<vmem>>, vector<8x8xf32>,
      %cst_19 = arith.constant 0.000000e+00 : f32
      %23 = vector.broadcast %cst_19 : f32 to vector<8x8xf32>
      %c0_20 = arith.constant 0 : index
      %c0_21 = arith.constant 0 : index
      %24 = vector.load %arg6[%c0_20, %c0_21] : memref<8x8xf32, #tpu.memory_space<vmem>>, vector<8x8xf32>
      tpu.vector_store %arg6[%c0_20, %c0_21], %23 {strides = array<i32>} : memref<8x8xf32, #tpu.memory_space<vmem>>, vector<8x8xf32>,
    } else {
    }
    %c0 = arith.constant 0 : index
    %c0_1 = arith.constant 0 : index
    %3 = vector.load %arg2[%c0, %c0_1] : memref<192x36xbf16, #tpu.memory_space<vmem>>, vector<192x36xbf16>
    %c0_2 = arith.constant 0 : index
    %c0_3 = arith.constant 0 : index
    %4 = vector.load %arg3[%c0_2, %c0_3] : memref<36x8xbf16, #tpu.memory_space<vmem>>, vector<36x8xbf16>
    %cst = arith.constant dense<0.000000e+00> : vector<192x8xf32>
    %5 = tpu.matmul %3, %4, %cst {dimension_numbers = #tpu.dot_dimension_numbers<[1], [0], [0], [1], [0, 0, 1, 1], [], []>} : vector<192x36xbf16>, vector<36x8xbf16>, vector<192x8xf32> -> vector<192x8xf32>
    %6 = arith.truncf %5 : vector<192x8xf32> to vector<192x8xbf16>
    %c0_4 = arith.constant 0 : index
    %c0_5 = arith.constant 0 : index
    %7 = vector.load %arg4[%c0_4, %c0_5] : memref<192x8xbf16, #tpu.memory_space<vmem>>, vector<192x8xbf16>
    tpu.vector_store %arg4[%c0_4, %c0_5], %6 {strides = array<i32>} : memref<192x8xbf16, #tpu.memory_space<vmem>>, vector<192x8xbf16>,
    %c0_6 = arith.constant 0 : index
    %c0_7 = arith.constant 0 : index
    %8 = vector.load %arg5[%c0_6, %c0_7] : memref<8x8xf32, #tpu.memory_space<vmem>>, vector<8x8xf32>
    %cst_8 = arith.constant dense<0.000000e+00> : vector<8xf32>
    %9 = vector.multi_reduction <add>, %5, %cst_8 [0] : vector<192x8xf32> to vector<8xf32>
    %10 = vector.shape_cast %9 : vector<8xf32> to vector<1x8xf32>
    %11 = vector.broadcast %10 : vector<1x8xf32> to vector<8x8xf32>
    %12 = arith.addf %8, %11 : vector<8x8xf32>
    %c0_9 = arith.constant 0 : index
    %c0_10 = arith.constant 0 : index
    %13 = vector.load %arg5[%c0_9, %c0_10] : memref<8x8xf32, #tpu.memory_space<vmem>>, vector<8x8xf32>
    tpu.vector_store %arg5[%c0_9, %c0_10], %12 {strides = array<i32>} : memref<8x8xf32, #tpu.memory_space<vmem>>, vector<8x8xf32>,
    %c0_11 = arith.constant 0 : index
    %c0_12 = arith.constant 0 : index
    %14 = vector.load %arg6[%c0_11, %c0_12] : memref<8x8xf32, #tpu.memory_space<vmem>>, vector<8x8xf32>
    %15 = arith.mulf %5, %5 : vector<192x8xf32>
    %cst_13 = arith.constant dense<0.000000e+00> : vector<8xf32>
    %16 = vector.multi_reduction <add>, %15, %cst_13 [0] : vector<192x8xf32> to vector<8xf32>
    %17 = vector.shape_cast %16 : vector<8xf32> to vector<1x8xf32>
    %18 = vector.broadcast %17 : vector<1x8xf32> to vector<8x8xf32>
    %19 = arith.addf %14, %18 : vector<8x8xf32>
    %c0_14 = arith.constant 0 : index
    %c0_15 = arith.constant 0 : index
    %20 = vector.load %arg6[%c0_14, %c0_15] : memref<8x8xf32, #tpu.memory_space<vmem>>, vector<8x8xf32>
    tpu.vector_store %arg6[%c0_14, %c0_15], %19 {strides = array<i32>} : memref<8x8xf32, #tpu.memory_space<vmem>>, vector<8x8xf32>,
    return
  }
  func.func @transform_0(%arg0: i32, %arg1: i32) -> (i32, i32) {
    %c1_i32 = arith.constant 1 : i32
    %0 = arith.muli %arg0, %c1_i32 : i32
    %1 = arith.addi %0, %arg1 : i32
    %c0_i32 = arith.constant 0 : i32
    %c0_i32_0 = arith.constant 0 : i32
    return %1, %c0_i32 : i32, i32
  }
  func.func @transform_1(%arg0: i32, %arg1: i32) -> (i32, i32) {
    %c0_i32 = arith.constant 0 : i32
    %c0_i32_0 = arith.constant 0 : i32
    %c0_i32_1 = arith.constant 0 : i32
    return %c0_i32, %c0_i32_0 : i32, i32
  }
  func.func @transform_2(%arg0: i32, %arg1: i32) -> (i32, i32) {
    %c1_i32 = arith.constant 1 : i32
    %0 = arith.muli %arg0, %c1_i32 : i32
    %1 = arith.addi %0, %arg1 : i32
    %c0_i32 = arith.constant 0 : i32
    %c0_i32_0 = arith.constant 0 : i32
    return %1, %c0_i32 : i32, i32
  }
  func.func @transform_3(%arg0: i32, %arg1: i32) -> (i32, i32) {
    %c0_i32 = arith.constant 0 : i32
    %c0_i32_0 = arith.constant 0 : i32
    return %arg0, %c0_i32 : i32, i32
  }
  func.func @transform_4(%arg0: i32, %arg1: i32) -> (i32, i32) {
    %c0_i32 = arith.constant 0 : i32
    %c0_i32_0 = arith.constant 0 : i32
    return %arg0, %c0_i32 : i32, i32
  }
}

module attributes {stable_mosaic.version = 11 : i64} {
  func.func @_epilogue_kernel(%arg0: i32, %arg1: memref<192x8xbf16, #tpu.memory_space<vmem>>, %arg2: memref<1x8xf32, #tpu.memory_space<vmem>>, %arg3: memref<1x8xf32, #tpu.memory_space<vmem>>, %arg4: memref<192x8xbf16, #tpu.memory_space<vmem>>) attributes {dimension_semantics = [#tpu.dimension_semantics<parallel>], iteration_bounds = array<i64: 1>, scalar_prefetch = 0 : i64, scratch_operands = 0 : i64, tpu.core_type = #tpu.core_type<tc>, window_params = [{transform_indices = @transform_0, window_bounds = array<i64: 192, 8>}, {pipeline_mode = #tpu.pipeline_mode<synchronous>, transform_indices = @transform_1, window_bounds = array<i64: 1, 8>}, {pipeline_mode = #tpu.pipeline_mode<synchronous>, transform_indices = @transform_2, window_bounds = array<i64: 1, 8>}, {transform_indices = @transform_3, window_bounds = array<i64: 192, 8>}]} {
    %c0 = arith.constant 0 : index
    %c0_0 = arith.constant 0 : index
    %0 = vector.load %arg1[%c0, %c0_0] : memref<192x8xbf16, #tpu.memory_space<vmem>>, vector<192x8xbf16>
    %1 = arith.extf %0 : vector<192x8xbf16> to vector<192x8xf32>
    %c0_1 = arith.constant 0 : index
    %c0_2 = arith.constant 0 : index
    %2 = vector.load %arg2[%c0_1, %c0_2] : memref<1x8xf32, #tpu.memory_space<vmem>>, vector<1x8xf32>
    %3 = vector.broadcast %2 : vector<1x8xf32> to vector<192x8xf32>
    %4 = arith.mulf %1, %3 : vector<192x8xf32>
    %c0_3 = arith.constant 0 : index
    %c0_4 = arith.constant 0 : index
    %5 = vector.load %arg3[%c0_3, %c0_4] : memref<1x8xf32, #tpu.memory_space<vmem>>, vector<1x8xf32>
    %6 = vector.broadcast %5 : vector<1x8xf32> to vector<192x8xf32>
    %7 = arith.addf %4, %6 : vector<192x8xf32>
    %cst = arith.constant 0.000000e+00 : f32
    %8 = vector.broadcast %cst : f32 to vector<192x8xf32>
    %9 = arith.maximumf %7, %8 : vector<192x8xf32>
    %10 = arith.truncf %9 : vector<192x8xf32> to vector<192x8xbf16>
    %c0_5 = arith.constant 0 : index
    %c0_6 = arith.constant 0 : index
    %11 = vector.load %arg4[%c0_5, %c0_6] : memref<192x8xbf16, #tpu.memory_space<vmem>>, vector<192x8xbf16>
    tpu.vector_store %arg4[%c0_5, %c0_6], %10 {strides = array<i32>} : memref<192x8xbf16, #tpu.memory_space<vmem>>, vector<192x8xbf16>,
    return
  }
  func.func @transform_0(%arg0: i32) -> (i32, i32) {
    %c0_i32 = arith.constant 0 : i32
    %c0_i32_0 = arith.constant 0 : i32
    return %arg0, %c0_i32 : i32, i32
  }
  func.func @transform_1(%arg0: i32) -> (i32, i32) {
    %c0_i32 = arith.constant 0 : i32
    %c0_i32_0 = arith.constant 0 : i32
    %c0_i32_1 = arith.constant 0 : i32
    return %c0_i32, %c0_i32_0 : i32, i32
  }
  func.func @transform_2(%arg0: i32) -> (i32, i32) {
    %c0_i32 = arith.constant 0 : i32
    %c0_i32_0 = arith.constant 0 : i32
    %c0_i32_1 = arith.constant 0 : i32
    return %c0_i32, %c0_i32_0 : i32, i32
  }
  func.func @transform_3(%arg0: i32) -> (i32, i32) {
    %c0_i32 = arith.constant 0 : i32
    %c0_i32_0 = arith.constant 0 : i32
    return %arg0, %c0_i32 : i32, i32
  }
}

module attributes {stable_mosaic.version = 11 : i64} {
  func.func @_conv_stats_kernel(%arg0: i32, %arg1: i32, %arg2: memref<192x72xbf16, #tpu.memory_space<vmem>>, %arg3: memref<72x8xbf16, #tpu.memory_space<vmem>>, %arg4: memref<192x4xbf16, #tpu.memory_space<vmem>>, %arg5: memref<4x8xbf16, #tpu.memory_space<vmem>>, %arg6: memref<192x8xbf16, #tpu.memory_space<vmem>>, %arg7: memref<8x8xf32, #tpu.memory_space<vmem>>, %arg8: memref<8x8xf32, #tpu.memory_space<vmem>>, %arg9: memref<192x8xbf16, #tpu.memory_space<vmem>>, %arg10: memref<8x8xf32, #tpu.memory_space<vmem>>, %arg11: memref<8x8xf32, #tpu.memory_space<vmem>>) attributes {dimension_semantics = [#tpu.dimension_semantics<parallel>, #tpu.dimension_semantics<arbitrary>], iteration_bounds = array<i64: 1, 1>, scalar_prefetch = 0 : i64, scratch_operands = 0 : i64, tpu.core_type = #tpu.core_type<tc>, window_params = [{transform_indices = @transform_0, window_bounds = array<i64: 192, 72>}, {pipeline_mode = #tpu.pipeline_mode<synchronous>, transform_indices = @transform_1, window_bounds = array<i64: 72, 8>}, {transform_indices = @transform_2, window_bounds = array<i64: 192, 4>}, {pipeline_mode = #tpu.pipeline_mode<synchronous>, transform_indices = @transform_3, window_bounds = array<i64: 4, 8>}, {transform_indices = @transform_4, window_bounds = array<i64: 192, 8>}, {transform_indices = @transform_5, window_bounds = array<i64: 8, 8>}, {transform_indices = @transform_6, window_bounds = array<i64: 8, 8>}, {transform_indices = @transform_7, window_bounds = array<i64: 192, 8>}, {transform_indices = @transform_8, window_bounds = array<i64: 8, 8>}, {transform_indices = @transform_9, window_bounds = array<i64: 8, 8>}]} {
    %c0_i32 = arith.constant 0 : i32
    %0 = arith.cmpi eq, %arg1, %c0_i32 : i32
    %1 = arith.extui %0 : i1 to i32
    %c0_i32_0 = arith.constant 0 : i32
    %2 = arith.cmpi ne, %1, %c0_i32_0 : i32
    scf.if %2 {
      %cst_33 = arith.constant 0.000000e+00 : f32
      %39 = vector.broadcast %cst_33 : f32 to vector<8x8xf32>
      %c0_34 = arith.constant 0 : index
      %c0_35 = arith.constant 0 : index
      %40 = vector.load %arg7[%c0_34, %c0_35] : memref<8x8xf32, #tpu.memory_space<vmem>>, vector<8x8xf32>
      tpu.vector_store %arg7[%c0_34, %c0_35], %39 {strides = array<i32>} : memref<8x8xf32, #tpu.memory_space<vmem>>, vector<8x8xf32>,
      %cst_36 = arith.constant 0.000000e+00 : f32
      %41 = vector.broadcast %cst_36 : f32 to vector<8x8xf32>
      %c0_37 = arith.constant 0 : index
      %c0_38 = arith.constant 0 : index
      %42 = vector.load %arg8[%c0_37, %c0_38] : memref<8x8xf32, #tpu.memory_space<vmem>>, vector<8x8xf32>
      tpu.vector_store %arg8[%c0_37, %c0_38], %41 {strides = array<i32>} : memref<8x8xf32, #tpu.memory_space<vmem>>, vector<8x8xf32>,
      %cst_39 = arith.constant 0.000000e+00 : f32
      %43 = vector.broadcast %cst_39 : f32 to vector<8x8xf32>
      %c0_40 = arith.constant 0 : index
      %c0_41 = arith.constant 0 : index
      %44 = vector.load %arg10[%c0_40, %c0_41] : memref<8x8xf32, #tpu.memory_space<vmem>>, vector<8x8xf32>
      tpu.vector_store %arg10[%c0_40, %c0_41], %43 {strides = array<i32>} : memref<8x8xf32, #tpu.memory_space<vmem>>, vector<8x8xf32>,
      %cst_42 = arith.constant 0.000000e+00 : f32
      %45 = vector.broadcast %cst_42 : f32 to vector<8x8xf32>
      %c0_43 = arith.constant 0 : index
      %c0_44 = arith.constant 0 : index
      %46 = vector.load %arg11[%c0_43, %c0_44] : memref<8x8xf32, #tpu.memory_space<vmem>>, vector<8x8xf32>
      tpu.vector_store %arg11[%c0_43, %c0_44], %45 {strides = array<i32>} : memref<8x8xf32, #tpu.memory_space<vmem>>, vector<8x8xf32>,
    } else {
    }
    %c0 = arith.constant 0 : index
    %c0_1 = arith.constant 0 : index
    %3 = vector.load %arg2[%c0, %c0_1] : memref<192x72xbf16, #tpu.memory_space<vmem>>, vector<192x72xbf16>
    %c0_2 = arith.constant 0 : index
    %c0_3 = arith.constant 0 : index
    %4 = vector.load %arg3[%c0_2, %c0_3] : memref<72x8xbf16, #tpu.memory_space<vmem>>, vector<72x8xbf16>
    %cst = arith.constant dense<0.000000e+00> : vector<192x8xf32>
    %5 = tpu.matmul %3, %4, %cst {dimension_numbers = #tpu.dot_dimension_numbers<[1], [0], [0], [1], [0, 0, 1, 1], [], []>} : vector<192x72xbf16>, vector<72x8xbf16>, vector<192x8xf32> -> vector<192x8xf32>
    %6 = arith.truncf %5 : vector<192x8xf32> to vector<192x8xbf16>
    %c0_4 = arith.constant 0 : index
    %c0_5 = arith.constant 0 : index
    %7 = vector.load %arg6[%c0_4, %c0_5] : memref<192x8xbf16, #tpu.memory_space<vmem>>, vector<192x8xbf16>
    tpu.vector_store %arg6[%c0_4, %c0_5], %6 {strides = array<i32>} : memref<192x8xbf16, #tpu.memory_space<vmem>>, vector<192x8xbf16>,
    %c0_6 = arith.constant 0 : index
    %c0_7 = arith.constant 0 : index
    %8 = vector.load %arg7[%c0_6, %c0_7] : memref<8x8xf32, #tpu.memory_space<vmem>>, vector<8x8xf32>
    %cst_8 = arith.constant dense<0.000000e+00> : vector<8xf32>
    %9 = vector.multi_reduction <add>, %5, %cst_8 [0] : vector<192x8xf32> to vector<8xf32>
    %10 = vector.shape_cast %9 : vector<8xf32> to vector<1x8xf32>
    %11 = vector.broadcast %10 : vector<1x8xf32> to vector<8x8xf32>
    %12 = arith.addf %8, %11 : vector<8x8xf32>
    %c0_9 = arith.constant 0 : index
    %c0_10 = arith.constant 0 : index
    %13 = vector.load %arg7[%c0_9, %c0_10] : memref<8x8xf32, #tpu.memory_space<vmem>>, vector<8x8xf32>
    tpu.vector_store %arg7[%c0_9, %c0_10], %12 {strides = array<i32>} : memref<8x8xf32, #tpu.memory_space<vmem>>, vector<8x8xf32>,
    %c0_11 = arith.constant 0 : index
    %c0_12 = arith.constant 0 : index
    %14 = vector.load %arg8[%c0_11, %c0_12] : memref<8x8xf32, #tpu.memory_space<vmem>>, vector<8x8xf32>
    %15 = arith.mulf %5, %5 : vector<192x8xf32>
    %cst_13 = arith.constant dense<0.000000e+00> : vector<8xf32>
    %16 = vector.multi_reduction <add>, %15, %cst_13 [0] : vector<192x8xf32> to vector<8xf32>
    %17 = vector.shape_cast %16 : vector<8xf32> to vector<1x8xf32>
    %18 = vector.broadcast %17 : vector<1x8xf32> to vector<8x8xf32>
    %19 = arith.addf %14, %18 : vector<8x8xf32>
    %c0_14 = arith.constant 0 : index
    %c0_15 = arith.constant 0 : index
    %20 = vector.load %arg8[%c0_14, %c0_15] : memref<8x8xf32, #tpu.memory_space<vmem>>, vector<8x8xf32>
    tpu.vector_store %arg8[%c0_14, %c0_15], %19 {strides = array<i32>} : memref<8x8xf32, #tpu.memory_space<vmem>>, vector<8x8xf32>,
    %c0_16 = arith.constant 0 : index
    %c0_17 = arith.constant 0 : index
    %21 = vector.load %arg4[%c0_16, %c0_17] : memref<192x4xbf16, #tpu.memory_space<vmem>>, vector<192x4xbf16>
    %c0_18 = arith.constant 0 : index
    %c0_19 = arith.constant 0 : index
    %22 = vector.load %arg5[%c0_18, %c0_19] : memref<4x8xbf16, #tpu.memory_space<vmem>>, vector<4x8xbf16>
    %cst_20 = arith.constant dense<0.000000e+00> : vector<192x8xf32>
    %23 = tpu.matmul %21, %22, %cst_20 {dimension_numbers = #tpu.dot_dimension_numbers<[1], [0], [0], [1], [0, 0, 1, 1], [], []>} : vector<192x4xbf16>, vector<4x8xbf16>, vector<192x8xf32> -> vector<192x8xf32>
    %24 = arith.truncf %23 : vector<192x8xf32> to vector<192x8xbf16>
    %c0_21 = arith.constant 0 : index
    %c0_22 = arith.constant 0 : index
    %25 = vector.load %arg9[%c0_21, %c0_22] : memref<192x8xbf16, #tpu.memory_space<vmem>>, vector<192x8xbf16>
    tpu.vector_store %arg9[%c0_21, %c0_22], %24 {strides = array<i32>} : memref<192x8xbf16, #tpu.memory_space<vmem>>, vector<192x8xbf16>,
    %c0_23 = arith.constant 0 : index
    %c0_24 = arith.constant 0 : index
    %26 = vector.load %arg10[%c0_23, %c0_24] : memref<8x8xf32, #tpu.memory_space<vmem>>, vector<8x8xf32>
    %cst_25 = arith.constant dense<0.000000e+00> : vector<8xf32>
    %27 = vector.multi_reduction <add>, %23, %cst_25 [0] : vector<192x8xf32> to vector<8xf32>
    %28 = vector.shape_cast %27 : vector<8xf32> to vector<1x8xf32>
    %29 = vector.broadcast %28 : vector<1x8xf32> to vector<8x8xf32>
    %30 = arith.addf %26, %29 : vector<8x8xf32>
    %c0_26 = arith.constant 0 : index
    %c0_27 = arith.constant 0 : index
    %31 = vector.load %arg10[%c0_26, %c0_27] : memref<8x8xf32, #tpu.memory_space<vmem>>, vector<8x8xf32>
    tpu.vector_store %arg10[%c0_26, %c0_27], %30 {strides = array<i32>} : memref<8x8xf32, #tpu.memory_space<vmem>>, vector<8x8xf32>,
    %c0_28 = arith.constant 0 : index
    %c0_29 = arith.constant 0 : index
    %32 = vector.load %arg11[%c0_28, %c0_29] : memref<8x8xf32, #tpu.memory_space<vmem>>, vector<8x8xf32>
    %33 = arith.mulf %23, %23 : vector<192x8xf32>
    %cst_30 = arith.constant dense<0.000000e+00> : vector<8xf32>
    %34 = vector.multi_reduction <add>, %33, %cst_30 [0] : vector<192x8xf32> to vector<8xf32>
    %35 = vector.shape_cast %34 : vector<8xf32> to vector<1x8xf32>
    %36 = vector.broadcast %35 : vector<1x8xf32> to vector<8x8xf32>
    %37 = arith.addf %32, %36 : vector<8x8xf32>
    %c0_31 = arith.constant 0 : index
    %c0_32 = arith.constant 0 : index
    %38 = vector.load %arg11[%c0_31, %c0_32] : memref<8x8xf32, #tpu.memory_space<vmem>>, vector<8x8xf32>
    tpu.vector_store %arg11[%c0_31, %c0_32], %37 {strides = array<i32>} : memref<8x8xf32, #tpu.memory_space<vmem>>, vector<8x8xf32>,
    return
  }
  func.func @transform_0(%arg0: i32, %arg1: i32) -> (i32, i32) {
    %c1_i32 = arith.constant 1 : i32
    %0 = arith.muli %arg0, %c1_i32 : i32
    %1 = arith.addi %0, %arg1 : i32
    %c0_i32 = arith.constant 0 : i32
    %c0_i32_0 = arith.constant 0 : i32
    return %1, %c0_i32 : i32, i32
  }
  func.func @transform_1(%arg0: i32, %arg1: i32) -> (i32, i32) {
    %c0_i32 = arith.constant 0 : i32
    %c0_i32_0 = arith.constant 0 : i32
    %c0_i32_1 = arith.constant 0 : i32
    return %c0_i32, %c0_i32_0 : i32, i32
  }
  func.func @transform_2(%arg0: i32, %arg1: i32) -> (i32, i32) {
    %c1_i32 = arith.constant 1 : i32
    %0 = arith.muli %arg0, %c1_i32 : i32
    %1 = arith.addi %0, %arg1 : i32
    %c0_i32 = arith.constant 0 : i32
    %c0_i32_0 = arith.constant 0 : i32
    return %1, %c0_i32 : i32, i32
  }
  func.func @transform_3(%arg0: i32, %arg1: i32) -> (i32, i32) {
    %c0_i32 = arith.constant 0 : i32
    %c0_i32_0 = arith.constant 0 : i32
    %c0_i32_1 = arith.constant 0 : i32
    return %c0_i32, %c0_i32_0 : i32, i32
  }
  func.func @transform_4(%arg0: i32, %arg1: i32) -> (i32, i32) {
    %c1_i32 = arith.constant 1 : i32
    %0 = arith.muli %arg0, %c1_i32 : i32
    %1 = arith.addi %0, %arg1 : i32
    %c0_i32 = arith.constant 0 : i32
    %c0_i32_0 = arith.constant 0 : i32
    return %1, %c0_i32 : i32, i32
  }
  func.func @transform_5(%arg0: i32, %arg1: i32) -> (i32, i32) {
    %c0_i32 = arith.constant 0 : i32
    %c0_i32_0 = arith.constant 0 : i32
    return %arg0, %c0_i32 : i32, i32
  }
  func.func @transform_6(%arg0: i32, %arg1: i32) -> (i32, i32) {
    %c0_i32 = arith.constant 0 : i32
    %c0_i32_0 = arith.constant 0 : i32
    return %arg0, %c0_i32 : i32, i32
  }
  func.func @transform_7(%arg0: i32, %arg1: i32) -> (i32, i32) {
    %c1_i32 = arith.constant 1 : i32
    %0 = arith.muli %arg0, %c1_i32 : i32
    %1 = arith.addi %0, %arg1 : i32
    %c0_i32 = arith.constant 0 : i32
    %c0_i32_0 = arith.constant 0 : i32
    return %1, %c0_i32 : i32, i32
  }
  func.func @transform_8(%arg0: i32, %arg1: i32) -> (i32, i32) {
    %c0_i32 = arith.constant 0 : i32
    %c0_i32_0 = arith.constant 0 : i32
    return %arg0, %c0_i32 : i32, i32
  }
  func.func @transform_9(%arg0: i32, %arg1: i32) -> (i32, i32) {
    %c0_i32 = arith.constant 0 : i32
    %c0_i32_0 = arith.constant 0 : i32
    return %arg0, %c0_i32 : i32, i32
  }
}

module attributes {stable_mosaic.version = 11 : i64} {
  func.func @_epilogue_kernel(%arg0: i32, %arg1: memref<192x8xbf16, #tpu.memory_space<vmem>>, %arg2: memref<1x8xf32, #tpu.memory_space<vmem>>, %arg3: memref<1x8xf32, #tpu.memory_space<vmem>>, %arg4: memref<192x8xbf16, #tpu.memory_space<vmem>>, %arg5: memref<1x8xf32, #tpu.memory_space<vmem>>, %arg6: memref<1x8xf32, #tpu.memory_space<vmem>>, %arg7: memref<192x8xf32, #tpu.memory_space<vmem>>) attributes {dimension_semantics = [#tpu.dimension_semantics<parallel>], iteration_bounds = array<i64: 1>, scalar_prefetch = 0 : i64, scratch_operands = 0 : i64, tpu.core_type = #tpu.core_type<tc>, window_params = [{transform_indices = @transform_0, window_bounds = array<i64: 192, 8>}, {pipeline_mode = #tpu.pipeline_mode<synchronous>, transform_indices = @transform_1, window_bounds = array<i64: 1, 8>}, {pipeline_mode = #tpu.pipeline_mode<synchronous>, transform_indices = @transform_2, window_bounds = array<i64: 1, 8>}, {transform_indices = @transform_3, window_bounds = array<i64: 192, 8>}, {pipeline_mode = #tpu.pipeline_mode<synchronous>, transform_indices = @transform_4, window_bounds = array<i64: 1, 8>}, {pipeline_mode = #tpu.pipeline_mode<synchronous>, transform_indices = @transform_5, window_bounds = array<i64: 1, 8>}, {transform_indices = @transform_6, window_bounds = array<i64: 192, 8>}]} {
    %c0 = arith.constant 0 : index
    %c0_0 = arith.constant 0 : index
    %0 = vector.load %arg1[%c0, %c0_0] : memref<192x8xbf16, #tpu.memory_space<vmem>>, vector<192x8xbf16>
    %1 = arith.extf %0 : vector<192x8xbf16> to vector<192x8xf32>
    %c0_1 = arith.constant 0 : index
    %c0_2 = arith.constant 0 : index
    %2 = vector.load %arg2[%c0_1, %c0_2] : memref<1x8xf32, #tpu.memory_space<vmem>>, vector<1x8xf32>
    %3 = vector.broadcast %2 : vector<1x8xf32> to vector<192x8xf32>
    %4 = arith.mulf %1, %3 : vector<192x8xf32>
    %c0_3 = arith.constant 0 : index
    %c0_4 = arith.constant 0 : index
    %5 = vector.load %arg3[%c0_3, %c0_4] : memref<1x8xf32, #tpu.memory_space<vmem>>, vector<1x8xf32>
    %6 = vector.broadcast %5 : vector<1x8xf32> to vector<192x8xf32>
    %7 = arith.addf %4, %6 : vector<192x8xf32>
    %c0_5 = arith.constant 0 : index
    %c0_6 = arith.constant 0 : index
    %8 = vector.load %arg4[%c0_5, %c0_6] : memref<192x8xbf16, #tpu.memory_space<vmem>>, vector<192x8xbf16>
    %9 = arith.extf %8 : vector<192x8xbf16> to vector<192x8xf32>
    %c0_7 = arith.constant 0 : index
    %c0_8 = arith.constant 0 : index
    %10 = vector.load %arg5[%c0_7, %c0_8] : memref<1x8xf32, #tpu.memory_space<vmem>>, vector<1x8xf32>
    %11 = vector.broadcast %10 : vector<1x8xf32> to vector<192x8xf32>
    %12 = arith.mulf %9, %11 : vector<192x8xf32>
    %c0_9 = arith.constant 0 : index
    %c0_10 = arith.constant 0 : index
    %13 = vector.load %arg6[%c0_9, %c0_10] : memref<1x8xf32, #tpu.memory_space<vmem>>, vector<1x8xf32>
    %14 = vector.broadcast %13 : vector<1x8xf32> to vector<192x8xf32>
    %15 = arith.addf %12, %14 : vector<192x8xf32>
    %16 = arith.addf %7, %15 : vector<192x8xf32>
    %cst = arith.constant 0.000000e+00 : f32
    %17 = vector.broadcast %cst : f32 to vector<192x8xf32>
    %18 = arith.maximumf %16, %17 : vector<192x8xf32>
    %c0_11 = arith.constant 0 : index
    %c0_12 = arith.constant 0 : index
    %19 = vector.load %arg7[%c0_11, %c0_12] : memref<192x8xf32, #tpu.memory_space<vmem>>, vector<192x8xf32>
    tpu.vector_store %arg7[%c0_11, %c0_12], %18 {strides = array<i32>} : memref<192x8xf32, #tpu.memory_space<vmem>>, vector<192x8xf32>,
    return
  }
  func.func @transform_0(%arg0: i32) -> (i32, i32) {
    %c0_i32 = arith.constant 0 : i32
    %c0_i32_0 = arith.constant 0 : i32
    return %arg0, %c0_i32 : i32, i32
  }
  func.func @transform_1(%arg0: i32) -> (i32, i32) {
    %c0_i32 = arith.constant 0 : i32
    %c0_i32_0 = arith.constant 0 : i32
    %c0_i32_1 = arith.constant 0 : i32
    return %c0_i32, %c0_i32_0 : i32, i32
  }
  func.func @transform_2(%arg0: i32) -> (i32, i32) {
    %c0_i32 = arith.constant 0 : i32
    %c0_i32_0 = arith.constant 0 : i32
    %c0_i32_1 = arith.constant 0 : i32
    return %c0_i32, %c0_i32_0 : i32, i32
  }
  func.func @transform_3(%arg0: i32) -> (i32, i32) {
    %c0_i32 = arith.constant 0 : i32
    %c0_i32_0 = arith.constant 0 : i32
    return %arg0, %c0_i32 : i32, i32
  }
  func.func @transform_4(%arg0: i32) -> (i32, i32) {
    %c0_i32 = arith.constant 0 : i32
    %c0_i32_0 = arith.constant 0 : i32
    %c0_i32_1 = arith.constant 0 : i32
    return %c0_i32, %c0_i32_0 : i32, i32
  }
  func.func @transform_5(%arg0: i32) -> (i32, i32) {
    %c0_i32 = arith.constant 0 : i32
    %c0_i32_0 = arith.constant 0 : i32
    %c0_i32_1 = arith.constant 0 : i32
    return %c0_i32, %c0_i32_0 : i32, i32
  }
  func.func @transform_6(%arg0: i32) -> (i32, i32) {
    %c0_i32 = arith.constant 0 : i32
    %c0_i32_0 = arith.constant 0 : i32
    return %arg0, %c0_i32 : i32, i32
  }
}

</mosaic_0001>

<llo_original>
// kernel: residual_block_forward.5
$region0: #{residual_block_forward.5}
  #allocation0 [shape = 'u32[]', space=smem, size = 0x4, offset = 0x4, fixed_abs, tag = 'smem constant byte address 0x4 - core index']
  #allocation1 [shape = 'u32[144,128]{1,0:T(1,128)}', space=vmem, size = 0x12000, scoped, tag = 'internal scratch']
  %s0 = inlined_call_operand.vmem [shape: bf16[192,8], index: 0, kind: input, shape index: {}]
  %s1 = inlined_call_operand.vmem [shape: f32[1,8], index: 1, kind: input, shape index: {}]
  %s2 = inlined_call_operand.vmem [shape: f32[1,8], index: 2, kind: input, shape index: {}]
  %s3 = inlined_call_operand.vmem [shape: bf16[192,8], index: 3, kind: output, shape index: {}]
  %s4 = sld [smem:[#allocation0]]
  $region22: #{residual_block_forward.5} parent=0
    _
  %s6 = ssub.s32 1, %s4
  %s7 = scalar_select 0, %s6, %s4
  // Predicated region
  $region2: #{residual_block_forward.5} parent=0 // pred_check
    _
  $region3: #{residual_block_forward.5} parent=0 // pred_check_branch
    %9 = sbr.rel (0) target = $region5
  $region4: #{residual_block_forward.5} parent=0 // pred_region
    _
  $region5: #{residual_block_forward.5} parent=0 // pred_fallthru
    _
  // Predicated region
  $region6: #{residual_block_forward.5} parent=0 // pred_check
    _
  $region7: #{residual_block_forward.5} parent=0 // pred_check_branch
    %11 = sbr.rel (0) target = $region9
  $region8: #{residual_block_forward.5} parent=0 // pred_region
    _
  $region9: #{residual_block_forward.5} parent=0 // pred_fallthru
    _
  // Predicated region
  $region10: #{residual_block_forward.5} parent=0 // pred_check
    _
  $region11: #{residual_block_forward.5} parent=0 // pred_check_branch
    %13 = sbr.rel (0) target = $region13
  $region12: #{residual_block_forward.5} parent=0 // pred_region
    _
  $region13: #{residual_block_forward.5} parent=0 // pred_fallthru
    _
  %v14 = vld [vmem:[%s0] sm:$0xf]
  %v15 = vld [vmem:[%s0 + $0x4] sm:$0xf]
  %v16 = vld [vmem:[%s0 + $0x8] sm:$0xf]
  %v17 = vld [vmem:[%s0 + $0xc] sm:$0xf]
  %v18 = vld [vmem:[%s0 + $0x10] sm:$0xf]
  %v19 = vld [vmem:[%s0 + $0x14] sm:$0xf]
  %v20 = vld [vmem:[%s0 + $0x18] sm:$0xf]
  %v21 = vld [vmem:[%s0 + $0x1c] sm:$0xf]
  %v22 = vld [vmem:[%s0 + $0x20] sm:$0xf]
  %v23 = vld [vmem:[%s0 + $0x24] sm:$0xf]
  %v24 = vld [vmem:[%s0 + $0x28] sm:$0xf]
  %v25 = vld [vmem:[%s0 + $0x2c] sm:$0xf]
  %v26 = vld [vmem:[%s0 + $0x30] sm:$0xf]
  %v27 = vld [vmem:[%s0 + $0x34] sm:$0xf]
  %v28 = vld [vmem:[%s0 + $0x38] sm:$0xf]
  %v29 = vld [vmem:[%s0 + $0x3c] sm:$0xf]
  %v30 = vld [vmem:[%s0 + $0x40] sm:$0xf]
  %v31 = vld [vmem:[%s0 + $0x44] sm:$0xf]
  %v32 = vld [vmem:[%s0 + $0x48] sm:$0xf]
  %v33 = vld [vmem:[%s0 + $0x4c] sm:$0xf]
  %v34 = vld [vmem:[%s0 + $0x50] sm:$0xf]
  %v35 = vld [vmem:[%s0 + $0x54] sm:$0xf]
  %v36 = vld [vmem:[%s0 + $0x58] sm:$0xf]
  %v37 = vld [vmem:[%s0 + $0x5c] sm:$0xf]
  %v38 = vunpack.c.l.bf16 %v14
  %v39 = vunpack.c.l.bf16 %v15
  %v40 = vunpack.c.l.bf16 %v16
  %v41 = vunpack.c.l.bf16 %v17
  %v42 = vunpack.c.l.bf16 %v18
  %v43 = vunpack.c.l.bf16 %v19
  %v44 = vunpack.c.l.bf16 %v20
  %v45 = vunpack.c.l.bf16 %v21
  %v46 = vunpack.c.l.bf16 %v22
  %v47 = vunpack.c.l.bf16 %v23
  %v48 = vunpack.c.l.bf16 %v24
  %v49 = vunpack.c.l.bf16 %v25
  %v50 = vunpack.c.l.bf16 %v26
  %v51 = vunpack.c.l.bf16 %v27
  %v52 = vunpack.c.l.bf16 %v28
  %v53 = vunpack.c.l.bf16 %v29
  %v54 = vunpack.c.l.bf16 %v30
  %v55 = vunpack.c.l.bf16 %v31
  %v56 = vunpack.c.l.bf16 %v32
  %v57 = vunpack.c.l.bf16 %v33
  %v58 = vunpack.c.l.bf16 %v34
  %v59 = vunpack.c.l.bf16 %v35
  %v60 = vunpack.c.l.bf16 %v36
  %v61 = vunpack.c.l.bf16 %v37
  %v62 = vld [vmem:[%s1] sm:$0x1]
  %v64 = vlaneseq
  %v65 = vshrl.u32 %v64, 7
  %v66 = vsub.s32 0, %v65
  %v67 = vrot.slane %v62, %v66
  %v69 = vmul.f32 %v38, %v67
  %v70 = vmul.f32 %v39, %v67
  %v71 = vmul.f32 %v40, %v67
  %v72 = vmul.f32 %v41, %v67
  %v73 = vmul.f32 %v42, %v67
  %v74 = vmul.f32 %v43, %v67
  %v75 = vmul.f32 %v44, %v67
  %v76 = vmul.f32 %v45, %v67
  %v77 = vmul.f32 %v46, %v67
  %v78 = vmul.f32 %v47, %v67
  %v79 = vmul.f32 %v48, %v67
  %v80 = vmul.f32 %v49, %v67
  %v81 = vmul.f32 %v50, %v67
  %v82 = vmul.f32 %v51, %v67
  %v83 = vmul.f32 %v52, %v67
  %v84 = vmul.f32 %v53, %v67
  %v85 = vmul.f32 %v54, %v67
  %v86 = vmul.f32 %v55, %v67
  %v87 = vmul.f32 %v56, %v67
  %v88 = vmul.f32 %v57, %v67
  %v89 = vmul.f32 %v58, %v67
  %v90 = vmul.f32 %v59, %v67
  %v91 = vmul.f32 %v60, %v67
  %v92 = vmul.f32 %v61, %v67
  %v93 = vld [vmem:[%s2] sm:$0x1]
  %v95 = vlaneseq
  %v96 = vshrl.u32 %v95, 7
  %v97 = vsub.s32 0, %v96
  %v98 = vrot.slane %v93, %v97
  %v100 = vadd.f32 %v69, %v98
  %v101 = vadd.f32 %v70, %v98
  %v102 = vadd.f32 %v71, %v98
  %v103 = vadd.f32 %v72, %v98
  %v104 = vadd.f32 %v73, %v98
  %v105 = vadd.f32 %v74, %v98
  %v106 = vadd.f32 %v75, %v98
  %v107 = vadd.f32 %v76, %v98
  %v108 = vadd.f32 %v77, %v98
  %v109 = vadd.f32 %v78, %v98
  %v110 = vadd.f32 %v79, %v98
  %v111 = vadd.f32 %v80, %v98
  %v112 = vadd.f32 %v81, %v98
  %v113 = vadd.f32 %v82, %v98
  %v114 = vadd.f32 %v83, %v98
  %v115 = vadd.f32 %v84, %v98
  %v116 = vadd.f32 %v85, %v98
  %v117 = vadd.f32 %v86, %v98
  %v118 = vadd.f32 %v87, %v98
  %v119 = vadd.f32 %v88, %v98
  %v120 = vadd.f32 %v89, %v98
  %v121 = vadd.f32 %v90, %v98
  %v122 = vadd.f32 %v91, %v98
  %v123 = vadd.f32 %v92, %v98
  %v124 = vmax.f32 %v100, 0.0
  %v125 = vmax.f32 %v101, 0.0
  %v126 = vmax.f32 %v102, 0.0
  %v127 = vmax.f32 %v103, 0.0
  %v128 = vmax.f32 %v104, 0.0
  %v129 = vmax.f32 %v105, 0.0
  %v130 = vmax.f32 %v106, 0.0
  %v131 = vmax.f32 %v107, 0.0
  %v132 = vmax.f32 %v108, 0.0
  %v133 = vmax.f32 %v109, 0.0
  %v134 = vmax.f32 %v110, 0.0
  %v135 = vmax.f32 %v111, 0.0
  %v136 = vmax.f32 %v112, 0.0
  %v137 = vmax.f32 %v113, 0.0
  %v138 = vmax.f32 %v114, 0.0
  %v139 = vmax.f32 %v115, 0.0
  %v140 = vmax.f32 %v116, 0.0
  %v141 = vmax.f32 %v117, 0.0
  %v142 = vmax.f32 %v118, 0.0
  %v143 = vmax.f32 %v119, 0.0
  %v144 = vmax.f32 %v120, 0.0
  %v145 = vmax.f32 %v121, 0.0
  %v146 = vmax.f32 %v122, 0.0
  %v147 = vmax.f32 %v123, 0.0
  %v148 = vpack.c.bf16 %v125, %v124
  %v149 = vpack.c.bf16 %v127, %v126
  %v150 = vpack.c.bf16 %v129, %v128
  %v151 = vpack.c.bf16 %v131, %v130
  %v152 = vpack.c.bf16 %v133, %v132
  %v153 = vpack.c.bf16 %v135, %v134
  %v154 = vpack.c.bf16 %v137, %v136
  %v155 = vpack.c.bf16 %v139, %v138
  %v156 = vpack.c.bf16 %v141, %v140
  %v157 = vpack.c.bf16 %v143, %v142
  %v158 = vpack.c.bf16 %v145, %v144
  %v159 = vpack.c.bf16 %v147, %v146
  %v172 = vunpack.c.l.b16 %v148
  %v173 = vunpack.c.h.b16 %v148
  %v174 = vunpack.c.l.b16 %v149
  %v175 = vunpack.c.h.b16 %v149
  %v176 = vunpack.c.l.b16 %v150
  %v177 = vunpack.c.h.b16 %v150
  %v178 = vunpack.c.l.b16 %v151
  %v179 = vunpack.c.h.b16 %v151
  %v180 = vunpack.c.l.b16 %v152
  %v181 = vunpack.c.h.b16 %v152
  %v182 = vunpack.c.l.b16 %v153
  %v183 = vunpack.c.h.b16 %v153
  %v184 = vunpack.c.l.b16 %v154
  %v185 = vunpack.c.h.b16 %v154
  %v186 = vunpack.c.l.b16 %v155
  %v187 = vunpack.c.h.b16 %v155
  %v188 = vunpack.c.l.b16 %v156
  %v189 = vunpack.c.h.b16 %v156
  %v190 = vunpack.c.l.b16 %v157
  %v191 = vunpack.c.h.b16 %v157
  %v192 = vunpack.c.l.b16 %v158
  %v193 = vunpack.c.h.b16 %v158
  %v194 = vunpack.c.l.b16 %v159
  %v195 = vunpack.c.h.b16 %v159
  %v196 = vpack.c.b16 %v172, %v172
  %v197 = vpack.c.b16 %v173, %v173
  %v198 = vpack.c.b16 %v174, %v174
  %v199 = vpack.c.b16 %v175, %v175
  %v200 = vpack.c.b16 %v176, %v176
  %v201 = vpack.c.b16 %v177, %v177
  %v202 = vpack.c.b16 %v178, %v178
  %v203 = vpack.c.b16 %v179, %v179
  %v204 = vpack.c.b16 %v180, %v180
  %v205 = vpack.c.b16 %v181, %v181
  %v206 = vpack.c.b16 %v182, %v182
  %v207 = vpack.c.b16 %v183, %v183
  %v208 = vpack.c.b16 %v184, %v184
  %v209 = vpack.c.b16 %v185, %v185
  %v210 = vpack.c.b16 %v186, %v186
  %v211 = vpack.c.b16 %v187, %v187
  %v212 = vpack.c.b16 %v188, %v188
  %v213 = vpack.c.b16 %v189, %v189
  %v214 = vpack.c.b16 %v190, %v190
  %v215 = vpack.c.b16 %v191, %v191
  %v216 = vpack.c.b16 %v192, %v192
  %v217 = vpack.c.b16 %v193, %v193
  %v218 = vpack.c.b16 %v194, %v194
  %v219 = vpack.c.b16 %v195, %v195
  %vm244 = vcmask 60416
  %245 = vst.msk [vmem:[%s3] sm:$0xf] %vm244, %v196
  %246 = vst.msk [vmem:[%s3 + $0x4] sm:$0xf] %vm244, %v197
  %247 = vst.msk [vmem:[%s3 + $0x8] sm:$0xf] %vm244, %v198
  %248 = vst.msk [vmem:[%s3 + $0xc] sm:$0xf] %vm244, %v199
  %249 = vst.msk [vmem:[%s3 + $0x10] sm:$0xf] %vm244, %v200
  %250 = vst.msk [vmem:[%s3 + $0x14] sm:$0xf] %vm244, %v201
  %251 = vst.msk [vmem:[%s3 + $0x18] sm:$0xf] %vm244, %v202
  %252 = vst.msk [vmem:[%s3 + $0x1c] sm:$0xf] %vm244, %v203
  %253 = vst.msk [vmem:[%s3 + $0x20] sm:$0xf] %vm244, %v204
  %254 = vst.msk [vmem:[%s3 + $0x24] sm:$0xf] %vm244, %v205
  %255 = vst.msk [vmem:[%s3 + $0x28] sm:$0xf] %vm244, %v206
  %256 = vst.msk [vmem:[%s3 + $0x2c] sm:$0xf] %vm244, %v207
  %257 = vst.msk [vmem:[%s3 + $0x30] sm:$0xf] %vm244, %v208
  %258 = vst.msk [vmem:[%s3 + $0x34] sm:$0xf] %vm244, %v209
  %259 = vst.msk [vmem:[%s3 + $0x38] sm:$0xf] %vm244, %v210
  %260 = vst.msk [vmem:[%s3 + $0x3c] sm:$0xf] %vm244, %v211
  %261 = vst.msk [vmem:[%s3 + $0x40] sm:$0xf] %vm244, %v212
  %262 = vst.msk [vmem:[%s3 + $0x44] sm:$0xf] %vm244, %v213
  %263 = vst.msk [vmem:[%s3 + $0x48] sm:$0xf] %vm244, %v214
  %264 = vst.msk [vmem:[%s3 + $0x4c] sm:$0xf] %vm244, %v215
  %265 = vst.msk [vmem:[%s3 + $0x50] sm:$0xf] %vm244, %v216
  %266 = vst.msk [vmem:[%s3 + $0x54] sm:$0xf] %vm244, %v217
  %267 = vst.msk [vmem:[%s3 + $0x58] sm:$0xf] %vm244, %v218
  %268 = vst.msk [vmem:[%s3 + $0x5c] sm:$0xf] %vm244, %v219
  // Predicated region
  $region14: #{residual_block_forward.5} parent=0 // pred_check
    _
  $region15: #{residual_block_forward.5} parent=0 // pred_check_branch
    %270 = sbr.rel (0) target = $region17
  $region16: #{residual_block_forward.5} parent=0 // pred_region
    _
  $region17: #{residual_block_forward.5} parent=0 // pred_fallthru
    _
  // Predicated region
  $region18: #{residual_block_forward.5} parent=0 // pred_check
    _
  $region19: #{residual_block_forward.5} parent=0 // pred_check_branch
    %272 = sbr.rel (0) target = $region21
  $region20: #{residual_block_forward.5} parent=0 // pred_region
    _
  $region21: #{residual_block_forward.5} parent=0 // pred_fallthru
    _

// kernel: residual_block_forward.4
$region0: #{residual_block_forward.4}
  #allocation0 [shape = 'u32[]', space=smem, size = 0x4, offset = 0x4, fixed_abs, tag = 'smem constant byte address 0x4 - core index']
  #allocation1 [shape = 'u32[144,128]{1,0:T(1,128)}', space=vmem, size = 0x12000, scoped, tag = 'internal scratch']
  %s0 = inlined_call_operand.vmem [shape: bf16[192,36], index: 0, kind: input, shape index: {}]
  %s1 = inlined_call_operand.vmem [shape: bf16[36,8], index: 1, kind: input, shape index: {}]
  %s2 = inlined_call_operand.vmem [shape: bf16[192,8], index: 2, kind: output, shape index: {0}]
  %s3 = inlined_call_operand.vmem [shape: f32[8,8], index: 3, kind: output, shape index: {1}]
  %s4 = inlined_call_operand.vmem [shape: f32[8,8], index: 4, kind: output, shape index: {2}]
  %5 = xla_tuple %s2, %s3, %s4
  %s6 = sld [smem:[#allocation0]]
  $region38: #{residual_block_forward.4} parent=0
    _
  %s8 = ssub.s32 1, %s6
  %s9 = scalar_select 0, %s8, %s6
  // Predicated region
  $region2: #{residual_block_forward.4} parent=0 // pred_check
    _
  $region3: #{residual_block_forward.4} parent=0 // pred_check_branch
    %11 = sbr.rel (0) target = $region5
  $region4: #{residual_block_forward.4} parent=0 // pred_region
    %s12 = sadd.s32 0, 0
    %s13 = smul.u32 24, %s12
    %p14 = scmp.lt.s32.totalorder %s13, 23
    %s15 = scalar_select %p14, %s13, 23
    %s16 = smul.addr %s15, 4
    %s17 = scalar_lea.vmem %s0, %s16
    %s18 = sadd.s32 0, 0
    %s19 = smul.u32 24, %s18
  $region5: #{residual_block_forward.4} parent=0 // pred_fallthru
    _
  // Predicated region
  $region6: #{residual_block_forward.4} parent=0 // pred_check
    _
  $region7: #{residual_block_forward.4} parent=0 // pred_check_branch
    %21 = sbr.rel (0) target = $region9
  $region8: #{residual_block_forward.4} parent=0 // pred_region
    _
  $region9: #{residual_block_forward.4} parent=0 // pred_fallthru
    _
  %s22 = sadd.s32 0, 0
  %s23 = smul.u32 24, %s22
  %p24 = scmp.lt.s32.totalorder %s23, 23
  %s25 = scalar_select %p24, %s23, 23
  %s26 = smul.addr %s25, 4
  %s27 = scalar_lea.vmem %s0, %s26
  %s28 = sadd.s32 0, 0
  %s29 = smul.u32 24, %s28
  %p30 = scmp.lt.s32.totalorder %s29, 23
  %s31 = scalar_select %p30, %s29, 23
  %s32 = smul.addr %s31, 4
  %s33 = scalar_lea.vmem %s2, %s32
  %s34 = sadd.s32 0, 0
  %s35 = smul.u32 24, %s34
  %p36 = scmp.lt.s32.totalorder %s35, 23
  %s37 = scalar_select %p36, %s35, 23
  %s38 = smul.addr %s37, 4
  %s39 = scalar_lea.vmem %s0, %s38
  %s40 = sadd.s32 0, 0
  %s41 = smul.u32 24, %s40
  %s42 = sadd.s32 0, 0
  %s43 = smul.u32 24, %s42
  %p44 = scmp.lt.s32.totalorder %s43, 23
  %s45 = scalar_select %p44, %s43, 23
  %s46 = smul.addr %s45, 4
  %s47 = scalar_lea.vmem %s2, %s46
  %s48 = sadd.s32 0, 0
  %s49 = smul.u32 24, %s48
  %p51 = scmp.eq.s32.totalorder 0, 0
  // Predicated region
  $region10: #{residual_block_forward.4} parent=0 // pred_check
    %p52 = pneg %p51
  $region11: #{residual_block_forward.4} parent=0 // pred_check_branch
    %54 = sbr.rel (%p52) target = $region13
  $region12: #{residual_block_forward.4} parent=0 // pred_region
    %vm55 = vcmask 64512
    %56 = vst.msk [vmem:[%s3] sm:$0xff] %vm55, 0.0
    %57 = vst.msk [vmem:[%s4] sm:$0xff] %vm55, 0.0
  $region13: #{residual_block_forward.4} parent=0 // pred_fallthru
    _
  %v58 = vld [vmem:[%s39] sm:$0xf]
  %v59 = vld [vmem:[%s39 + $0x4] sm:$0xf]
  %v60 = vld [vmem:[%s39 + $0x8] sm:$0xf]
  %v61 = vld [vmem:[%s39 + $0xc] sm:$0xf]
  %v62 = vld [vmem:[%s39 + $0x10] sm:$0xf]
  %v63 = vld [vmem:[%s39 + $0x14] sm:$0xf]
  %v64 = vld [vmem:[%s39 + $0x18] sm:$0xf]
  %v65 = vld [vmem:[%s39 + $0x1c] sm:$0xf]
  %v66 = vld [vmem:[%s39 + $0x20] sm:$0xf]
  %v67 = vld [vmem:[%s39 + $0x24] sm:$0xf]
  %v68 = vld [vmem:[%s39 + $0x28] sm:$0xf]
  %v69 = vld [vmem:[%s39 + $0x2c] sm:$0xf]
  %v70 = vld [vmem:[%s39 + $0x30] sm:$0xf]
  %v71 = vld [vmem:[%s39 + $0x34] sm:$0xf]
  %v72 = vld [vmem:[%s39 + $0x38] sm:$0xf]
  %v73 = vld [vmem:[%s39 + $0x3c] sm:$0xf]
  %v74 = vld [vmem:[%s39 + $0x40] sm:$0xf]
  %v75 = vld [vmem:[%s39 + $0x44] sm:$0xf]
  %v76 = vld [vmem:[%s39 + $0x48] sm:$0xf]
  %v77 = vld [vmem:[%s39 + $0x4c] sm:$0xf]
  %v78 = vld [vmem:[%s39 + $0x50] sm:$0xf]
  %v79 = vld [vmem:[%s39 + $0x54] sm:$0xf]
  %v80 = vld [vmem:[%s39 + $0x58] sm:$0xf]
  %v81 = vld [vmem:[%s39 + $0x5c] sm:$0xf]
  %v82 = vld [vmem:[%s1] sm:$0xf]
  %v83 = vld [vmem:[%s1 + $0x4] sm:$0xf]
  %v84 = vld [vmem:[%s1 + $0x8] sm:$0xf]
  %v85 = vld [vmem:[%s1 + $0xc] sm:$0xf]
  %v86 = vld [vmem:[%s1 + $0x10] sm:$0x3]
  %v111 = vunpack.c.l.b16 %v58
  %v112 = vunpack.c.l.b16 %v59
  %v113 = vunpack.c.l.b16 %v60
  %v114 = vunpack.c.l.b16 %v61
  %v115 = vunpack.c.l.b16 %v62
  %v116 = vunpack.c.l.b16 %v63
  %v117 = vunpack.c.l.b16 %v64
  %v118 = vunpack.c.l.b16 %v65
  %v119 = vunpack.c.l.b16 %v66
  %v120 = vunpack.c.l.b16 %v67
  %v121 = vunpack.c.l.b16 %v68
  %v122 = vunpack.c.l.b16 %v69
  %v123 = vunpack.c.l.b16 %v70
  %v124 = vunpack.c.l.b16 %v71
  %v125 = vunpack.c.l.b16 %v72
  %v126 = vunpack.c.l.b16 %v73
  %v127 = vunpack.c.l.b16 %v74
  %v128 = vunpack.c.l.b16 %v75
  %v129 = vunpack.c.l.b16 %v76
  %v130 = vunpack.c.l.b16 %v77
  %v131 = vunpack.c.l.b16 %v78
  %v132 = vunpack.c.l.b16 %v79
  %v133 = vunpack.c.l.b16 %v80
  %v134 = vunpack.c.l.b16 %v81
  %v135 = vpack.c.b16 %v112, %v111
  %v136 = vpack.c.b16 %v114, %v113
  %v137 = vpack.c.b16 %v116, %v115
  %v138 = vpack.c.b16 %v118, %v117
  %v139 = vpack.c.b16 %v120, %v119
  %v140 = vpack.c.b16 %v122, %v121
  %v141 = vpack.c.b16 %v124, %v123
  %v142 = vpack.c.b16 %v126, %v125
  %v143 = vpack.c.b16 %v128, %v127
  %v144 = vpack.c.b16 %v130, %v129
  %v145 = vpack.c.b16 %v132, %v131
  %v146 = vpack.c.b16 %v134, %v133
  %v152 = vunpack.c.l.b16 %v82
  %v153 = vunpack.c.l.b16 %v83
  %v154 = vunpack.c.l.b16 %v84
  %v155 = vunpack.c.l.b16 %v85
  %v156 = vunpack.c.l.b16 %v86
  %v157 = vpack.c.b16 %v153, %v152
  %v158 = vpack.c.b16 %v155, %v154
  %v159 = vpack.c.b16 %v156, %v156
  %vm162 = vcmask 293888
  %v164 = vsel %vm162, %v135, 0
  %v167 = vsel %vm162, %v136, 0
  %v170 = vsel %vm162, %v137, 0
  %v173 = vsel %vm162, %v138, 0
  %v176 = vsel %vm162, %v139, 0
  %v179 = vsel %vm162, %v140, 0
  %v182 = vsel %vm162, %v141, 0
  %v185 = vsel %vm162, %v142, 0
  %v188 = vsel %vm162, %v143, 0
  %v191 = vsel %vm162, %v144, 0
  %v194 = vsel %vm162, %v145, 0
  %v197 = vsel %vm162, %v146, 0
  %vm199 = vcmask 1041408
  %v201 = vsel %vm199, %v159, 0
  %203 = vmatprep.subr.bf16.mxu0 0
  %204 = vmatpush1.bf16.msra.mxu0 0
  %205 = vmatprep.subr.bf16.mxu0 0
  %206 = vmatpush1.bf16.msra.mxu0 0
  %207 = vmatprep.subr.bf16.mxu0 0
  %208 = vmatpush1.bf16.msra.mxu0 0
  %209 = vmatprep.subr.bf16.mxu0 0
  %210 = vmatpush1.bf16.msra.mxu0 0
  %211 = vmatprep.subr.bf16.mxu0 0
  %212 = vmatpush1.bf16.msra.mxu0 0
  %213 = vmatprep.subr.bf16.mxu0 0
  %214 = vmatpush1.bf16.msra.mxu0 %v201
  %215 = vmatprep.subr.bf16.mxu0 0
  %216 = vmatpush1.bf16.msra.mxu0 %v158
  %217 = vmatprep.subr.bf16.mxu0 0
  %218 = vmatpush1.bf16.msra.mxu0 %v157
  %219 = vmatprep.subr.bf16.mxu0 0
  %220 = vmatpush2.bf16.msra.mxu0 0
  %221 = vmatprep.subr.bf16.mxu0 0
  %222 = vmatpush2.bf16.msra.mxu0 0
  %223 = vmatprep.subr.bf16.mxu0 0
  %224 = vmatpush2.bf16.msra.mxu0 0
  %225 = vmatprep.subr.bf16.mxu0 0
  %226 = vmatpush2.bf16.msra.mxu0 0
  %227 = vmatprep.subr.bf16.mxu0 0
  %228 = vmatpush2.bf16.msra.mxu0 0
  %229 = vmatprep.subr.bf16.mxu0 0
  %230 = vmatpush2.bf16.msra.mxu0 0
  %231 = vmatprep.subr.bf16.mxu0 0
  %232 = vmatpush2.bf16.msra.mxu0 0
  %233 = vmatprep.subr.bf16.mxu0 0
  %234 = vmatpush2.bf16.msra.mxu0 0
  %235 = vmatprep.mubr.bf16.mxu0 0
  %236 = vmatmul.mubr.bf16.gmra.mxu0 %v164
  %v237 = vpop.f32.mrf.mxu0
  %v238 = vadd.f32 0.0, %v237
  %v239 = vpop.f32.mrf.mxu0
  %v240 = vpop.f32.mrf.mxu0
  %v241 = vadd.f32 0.0, %v240
  %v242 = vpop.f32.mrf.mxu0
  %243 = vmatprep.mubr.bf16.mxu0 0
  %244 = vmatmul.mubr.bf16.gmra.mxu0 %v167
  %v245 = vpop.f32.mrf.mxu0
  %v246 = vadd.f32 0.0, %v245
  %v247 = vpop.f32.mrf.mxu0
  %v248 = vpop.f32.mrf.mxu0
  %v249 = vadd.f32 0.0, %v248
  %v250 = vpop.f32.mrf.mxu0
  %251 = vmatprep.mubr.bf16.mxu0 0
  %252 = vmatmul.mubr.bf16.gmra.mxu0 %v170
  %v253 = vpop.f32.mrf.mxu0
  %v254 = vadd.f32 0.0, %v253
  %v255 = vpop.f32.mrf.mxu0
  %v256 = vpop.f32.mrf.mxu0
  %v257 = vadd.f32 0.0, %v256
  %v258 = vpop.f32.mrf.mxu0
  %259 = vmatprep.mubr.bf16.mxu0 0
  %260 = vmatmul.mubr.bf16.gmra.mxu0 %v173
  %v261 = vpop.f32.mrf.mxu0
  %v262 = vadd.f32 0.0, %v261
  %v263 = vpop.f32.mrf.mxu0
  %v264 = vpop.f32.mrf.mxu0
  %v265 = vadd.f32 0.0, %v264
  %v266 = vpop.f32.mrf.mxu0
  %267 = vmatprep.mubr.bf16.mxu0 0
  %268 = vmatmul.mubr.bf16.gmra.mxu0 %v176
  %v269 = vpop.f32.mrf.mxu0
  %v270 = vadd.f32 0.0, %v269
  %v271 = vpop.f32.mrf.mxu0
  %v272 = vpop.f32.mrf.mxu0
  %v273 = vadd.f32 0.0, %v272
  %v274 = vpop.f32.mrf.mxu0
  %275 = vmatprep.mubr.bf16.mxu0 0
  %276 = vmatmul.mubr.bf16.gmra.mxu0 %v179
  %v277 = vpop.f32.mrf.mxu0
  %v278 = vadd.f32 0.0, %v277
  %v279 = vpop.f32.mrf.mxu0
  %v280 = vpop.f32.mrf.mxu0
  %v281 = vadd.f32 0.0, %v280
  %v282 = vpop.f32.mrf.mxu0
  %283 = vmatprep.mubr.bf16.mxu0 0
  %284 = vmatmul.mubr.bf16.gmra.mxu0 %v182
  %v285 = vpop.f32.mrf.mxu0
  %v286 = vadd.f32 0.0, %v285
  %v287 = vpop.f32.mrf.mxu0
  %v288 = vpop.f32.mrf.mxu0
  %v289 = vadd.f32 0.0, %v288
  %v290 = vpop.f32.mrf.mxu0
  %291 = vmatprep.mubr.bf16.mxu0 0
  %292 = vmatmul.mubr.bf16.gmra.mxu0 %v185
  %v293 = vpop.f32.mrf.mxu0
  %v294 = vadd.f32 0.0, %v293
  %v295 = vpop.f32.mrf.mxu0
  %v296 = vpop.f32.mrf.mxu0
  %v297 = vadd.f32 0.0, %v296
  %v298 = vpop.f32.mrf.mxu0
  %299 = vmatprep.mubr.bf16.mxu0 0
  %300 = vmatmul.mubr.bf16.gmra.mxu0 %v188
  %v301 = vpop.f32.mrf.mxu0
  %v302 = vadd.f32 0.0, %v301
  %v303 = vpop.f32.mrf.mxu0
  %v304 = vpop.f32.mrf.mxu0
  %v305 = vadd.f32 0.0, %v304
  %v306 = vpop.f32.mrf.mxu0
  %307 = vmatprep.mubr.bf16.mxu0 0
  %308 = vmatmul.mubr.bf16.gmra.mxu0 %v191
  %v309 = vpop.f32.mrf.mxu0
  %v310 = vadd.f32 0.0, %v309
  %v311 = vpop.f32.mrf.mxu0
  %v312 = vpop.f32.mrf.mxu0
  %v313 = vadd.f32 0.0, %v312
  %v314 = vpop.f32.mrf.mxu0
  %315 = vmatprep.mubr.bf16.mxu0 0
  %316 = vmatmul.mubr.bf16.gmra.mxu0 %v194
  %v317 = vpop.f32.mrf.mxu0
  %v318 = vadd.f32 0.0, %v317
  %v319 = vpop.f32.mrf.mxu0
  %v320 = vpop.f32.mrf.mxu0
  %v321 = vadd.f32 0.0, %v320
  %v322 = vpop.f32.mrf.mxu0
  %323 = vmatprep.mubr.bf16.mxu0 0
  %324 = vmatmul.mubr.bf16.gmra.mxu0 %v197
  %v325 = vpop.f32.mrf.mxu0
  %v326 = vadd.f32 0.0, %v325
  %v327 = vpop.f32.mrf.mxu0
  %v328 = vpop.f32.mrf.mxu0
  %v329 = vadd.f32 0.0, %v328
  %v330 = vpop.f32.mrf.mxu0
  %331 = vdwg.mxu0
  %v332 = vpack.c.bf16 %v241, %v238
  %v333 = vpack.c.bf16 %v249, %v246
  %v334 = vpack.c.bf16 %v257, %v254
  %v335 = vpack.c.bf16 %v265, %v262
  %v336 = vpack.c.bf16 %v273, %v270
  %v337 = vpack.c.bf16 %v281, %v278
  %v338 = vpack.c.bf16 %v289, %v286
  %v339 = vpack.c.bf16 %v297, %v294
  %v340 = vpack.c.bf16 %v305, %v302
  %v341 = vpack.c.bf16 %v313, %v310
  %v342 = vpack.c.bf16 %v321, %v318
  %v343 = vpack.c.bf16 %v329, %v326
  %v356 = vunpack.c.l.b16 %v332
  %v357 = vunpack.c.h.b16 %v332
  %v358 = vunpack.c.l.b16 %v333
  %v359 = vunpack.c.h.b16 %v333
  %v360 = vunpack.c.l.b16 %v334
  %v361 = vunpack.c.h.b16 %v334
  %v362 = vunpack.c.l.b16 %v335
  %v363 = vunpack.c.h.b16 %v335
  %v364 = vunpack.c.l.b16 %v336
  %v365 = vunpack.c.h.b16 %v336
  %v366 = vunpack.c.l.b16 %v337
  %v367 = vunpack.c.h.b16 %v337
  %v368 = vunpack.c.l.b16 %v338
  %v369 = vunpack.c.h.b16 %v338
  %v370 = vunpack.c.l.b16 %v339
  %v371 = vunpack.c.h.b16 %v339
  %v372 = vunpack.c.l.b16 %v340
  %v373 = vunpack.c.h.b16 %v340
  %v374 = vunpack.c.l.b16 %v341
  %v375 = vunpack.c.h.b16 %v341
  %v376 = vunpack.c.l.b16 %v342
  %v377 = vunpack.c.h.b16 %v342
  %v378 = vunpack.c.l.b16 %v343
  %v379 = vunpack.c.h.b16 %v343
  %v380 = vpack.c.b16 %v356, %v356
  %v381 = vpack.c.b16 %v357, %v357
  %v382 = vpack.c.b16 %v358, %v358
  %v383 = vpack.c.b16 %v359, %v359
  %v384 = vpack.c.b16 %v360, %v360
  %v385 = vpack.c.b16 %v361, %v361
  %v386 = vpack.c.b16 %v362, %v362
  %v387 = vpack.c.b16 %v363, %v363
  %v388 = vpack.c.b16 %v364, %v364
  %v389 = vpack.c.b16 %v365, %v365
  %v390 = vpack.c.b16 %v366, %v366
  %v391 = vpack.c.b16 %v367, %v367
  %v392 = vpack.c.b16 %v368, %v368
  %v393 = vpack.c.b16 %v369, %v369
  %v394 = vpack.c.b16 %v370, %v370
  %v395 = vpack.c.b16 %v371, %v371
  %v396 = vpack.c.b16 %v372, %v372
  %v397 = vpack.c.b16 %v373, %v373
  %v398 = vpack.c.b16 %v374, %v374
  %v399 = vpack.c.b16 %v375, %v375
  %v400 = vpack.c.b16 %v376, %v376
  %v401 = vpack.c.b16 %v377, %v377
  %v402 = vpack.c.b16 %v378, %v378
  %v403 = vpack.c.b16 %v379, %v379
  %vm428 = vcmask 60416
  %429 = vst.msk [vmem:[%s47] sm:$0xf] %vm428, %v380
  %430 = vst.msk [vmem:[%s47 + $0x4] sm:$0xf] %vm428, %v381
  %431 = vst.msk [vmem:[%s47 + $0x8] sm:$0xf] %vm428, %v382
  %432 = vst.msk [vmem:[%s47 + $0xc] sm:$0xf] %vm428, %v383
  %433 = vst.msk [vmem:[%s47 + $0x10] sm:$0xf] %vm428, %v384
  %434 = vst.msk [vmem:[%s47 + $0x14] sm:$0xf] %vm428, %v385
  %435 = vst.msk [vmem:[%s47 + $0x18] sm:$0xf] %vm428, %v386
  %436 = vst.msk [vmem:[%s47 + $0x1c] sm:$0xf] %vm428, %v387
  %437 = vst.msk [vmem:[%s47 + $0x20] sm:$0xf] %vm428, %v388
  %438 = vst.msk [vmem:[%s47 + $0x24] sm:$0xf] %vm428, %v389
  %439 = vst.msk [vmem:[%s47 + $0x28] sm:$0xf] %vm428, %v390
  %440 = vst.msk [vmem:[%s47 + $0x2c] sm:$0xf] %vm428, %v391
  %441 = vst.msk [vmem:[%s47 + $0x30] sm:$0xf] %vm428, %v392
  %442 = vst.msk [vmem:[%s47 + $0x34] sm:$0xf] %vm428, %v393
  %443 = vst.msk [vmem:[%s47 + $0x38] sm:$0xf] %vm428, %v394
  %444 = vst.msk [vmem:[%s47 + $0x3c] sm:$0xf] %vm428, %v395
  %445 = vst.msk [vmem:[%s47 + $0x40] sm:$0xf] %vm428, %v396
  %446 = vst.msk [vmem:[%s47 + $0x44] sm:$0xf] %vm428, %v397
  %447 = vst.msk [vmem:[%s47 + $0x48] sm:$0xf] %vm428, %v398
  %448 = vst.msk [vmem:[%s47 + $0x4c] sm:$0xf] %vm428, %v399
  %449 = vst.msk [vmem:[%s47 + $0x50] sm:$0xf] %vm428, %v400
  %450 = vst.msk [vmem:[%s47 + $0x54] sm:$0xf] %vm428, %v401
  %451 = vst.msk [vmem:[%s47 + $0x58] sm:$0xf] %vm428, %v402
  %452 = vst.msk [vmem:[%s47 + $0x5c] sm:$0xf] %vm428, %v403
  %v453 = vld [vmem:[%s3] sm:$0xff]
  %vm454 = vcmask 64512
  %v455 = vsel %vm454, %v238, 0.0
  %v456 = vsel %vm454, %v241, 0.0
  %v457 = vadd.f32 %v455, %v456
  %v458 = vsel %vm454, %v246, 0.0
  %v459 = vadd.f32 %v457, %v458
  %v460 = vsel %vm454, %v249, 0.0
  %v461 = vadd.f32 %v459, %v460
  %v462 = vsel %vm454, %v254, 0.0
  %v463 = vadd.f32 %v461, %v462
  %v464 = vsel %vm454, %v257, 0.0
  %v465 = vadd.f32 %v463, %v464
  %v466 = vsel %vm454, %v262, 0.0
  %v467 = vadd.f32 %v465, %v466
  %v468 = vsel %vm454, %v265, 0.0
  %v469 = vadd.f32 %v467, %v468
  %v470 = vsel %vm454, %v270, 0.0
  %v471 = vadd.f32 %v469, %v470
  %v472 = vsel %vm454, %v273, 0.0
  %v473 = vadd.f32 %v471, %v472
  %v474 = vsel %vm454, %v278, 0.0
  %v475 = vadd.f32 %v473, %v474
  %v476 = vsel %vm454, %v281, 0.0
  %v477 = vadd.f32 %v475, %v476
  %v478 = vsel %vm454, %v286, 0.0
  %v479 = vadd.f32 %v477, %v478
  %v480 = vsel %vm454, %v289, 0.0
  %v481 = vadd.f32 %v479, %v480
  %v482 = vsel %vm454, %v294, 0.0
  %v483 = vadd.f32 %v481, %v482
  %v484 = vsel %vm454, %v297, 0.0
  %v485 = vadd.f32 %v483, %v484
  %v486 = vsel %vm454, %v302, 0.0
  %v487 = vadd.f32 %v485, %v486
  %v488 = vsel %vm454, %v305, 0.0
  %v489 = vadd.f32 %v487, %v488
  %v490 = vsel %vm454, %v310, 0.0
  %v491 = vadd.f32 %v489, %v490
  %v492 = vsel %vm454, %v313, 0.0
  %v493 = vadd.f32 %v491, %v492
  %v494 = vsel %vm454, %v318, 0.0
  %v495 = vadd.f32 %v493, %v494
  %v496 = vsel %vm454, %v321, 0.0
  %v497 = vadd.f32 %v495, %v496
  %v498 = vsel %vm454, %v326, 0.0
  %v499 = vadd.f32 %v497, %v498
  %v500 = vsel %vm454, %v329, 0.0
  %v501 = vadd.f32 %v499, %v500
  %v502 = vrot.slane %v501, 4
  %v503 = vadd.f32 %v501, %v502
  %v504 = vrot.slane %v503, 2
  %v505 = vadd.f32 %v503, %v504
  %v506 = vrot.slane %v505, 1
  %v507 = vadd.f32 %v505, %v506
  %v508 = vadd.f32 %v453, %v507
  %509 = vst.msk [vmem:[%s3] sm:$0xff] %vm454, %v508
  %v510 = vld [vmem:[%s4] sm:$0xff]
  %v511 = vmul.f32 %v238, %v238
  %v512 = vmul.f32 %v241, %v241
  %v513 = vmul.f32 %v246, %v246
  %v514 = vmul.f32 %v249, %v249
  %v515 = vmul.f32 %v254, %v254
  %v516 = vmul.f32 %v257, %v257
  %v517 = vmul.f32 %v262, %v262
  %v518 = vmul.f32 %v265, %v265
  %v519 = vmul.f32 %v270, %v270
  %v520 = vmul.f32 %v273, %v273
  %v521 = vmul.f32 %v278, %v278
  %v522 = vmul.f32 %v281, %v281
  %v523 = vmul.f32 %v286, %v286
  %v524 = vmul.f32 %v289, %v289
  %v525 = vmul.f32 %v294, %v294
  %v526 = vmul.f32 %v297, %v297
  %v527 = vmul.f32 %v302, %v302
  %v528 = vmul.f32 %v305, %v305
  %v529 = vmul.f32 %v310, %v310
  %v530 = vmul.f32 %v313, %v313
  %v531 = vmul.f32 %v318, %v318
  %v532 = vmul.f32 %v321, %v321
  %v533 = vmul.f32 %v326, %v326
  %v534 = vmul.f32 %v329, %v329
  %v535 = vsel %vm454, %v511, 0.0
  %v536 = vsel %vm454, %v512, 0.0
  %v537 = vadd.f32 %v535, %v536
  %v538 = vsel %vm454, %v513, 0.0
  %v539 = vadd.f32 %v537, %v538
  %v540 = vsel %vm454, %v514, 0.0
  %v541 = vadd.f32 %v539, %v540
  %v542 = vsel %vm454, %v515, 0.0
  %v543 = vadd.f32 %v541, %v542
  %v544 = vsel %vm454, %v516, 0.0
  %v545 = vadd.f32 %v543, %v544
  %v546 = vsel %vm454, %v517, 0.0
  %v547 = vadd.f32 %v545, %v546
  %v548 = vsel %vm454, %v518, 0.0
  %v549 = vadd.f32 %v547, %v548
  %v550 = vsel %vm454, %v519, 0.0
  %v551 = vadd.f32 %v549, %v550
  %v552 = vsel %vm454, %v520, 0.0
  %v553 = vadd.f32 %v551, %v552
  %v554 = vsel %vm454, %v521, 0.0
  %v555 = vadd.f32 %v553, %v554
  %v556 = vsel %vm454, %v522, 0.0
  %v557 = vadd.f32 %v555, %v556
  %v558 = vsel %vm454, %v523, 0.0
  %v559 = vadd.f32 %v557, %v558
  %v560 = vsel %vm454, %v524, 0.0
  %v561 = vadd.f32 %v559, %v560
  %v562 = vsel %vm454, %v525, 0.0
  %v563 = vadd.f32 %v561, %v562
  %v564 = vsel %vm454, %v526, 0.0
  %v565 = vadd.f32 %v563, %v564
  %v566 = vsel %vm454, %v527, 0.0
  %v567 = vadd.f32 %v565, %v566
  %v568 = vsel %vm454, %v528, 0.0
  %v569 = vadd.f32 %v567, %v568
  %v570 = vsel %vm454, %v529, 0.0
  %v571 = vadd.f32 %v569, %v570
  %v572 = vsel %vm454, %v530, 0.0
  %v573 = vadd.f32 %v571, %v572
  %v574 = vsel %vm454, %v531, 0.0
  %v575 = vadd.f32 %v573, %v574
  %v576 = vsel %vm454, %v532, 0.0
  %v577 = vadd.f32 %v575, %v576
  %v578 = vsel %vm454, %v533, 0.0
  %v579 = vadd.f32 %v577, %v578
  %v580 = vsel %vm454, %v534, 0.0
  %v581 = vadd.f32 %v579, %v580
  %v582 = vrot.slane %v581, 4
  %v583 = vadd.f32 %v581, %v582
  %v584 = vrot.slane %v583, 2
  %v585 = vadd.f32 %v583, %v584
  %v586 = vrot.slane %v585, 1
  %v587 = vadd.f32 %v585, %v586
  %v588 = vadd.f32 %v510, %v587
  %589 = vst.msk [vmem:[%s4] sm:$0xff] %vm454, %v588
  %s590 = sadd.s32 0, 0
  %s591 = smul.u32 24, %s590
  %p592 = scmp.lt.s32.totalorder %s591, 23
  %s593 = scalar_select %p592, %s591, 23
  %s594 = smul.addr %s593, 4
  %s595 = scalar_lea.vmem %s2, %s594
  // Predicated region
  $region14: #{residual_block_forward.4} parent=0 // pred_check
    _
  $region15: #{residual_block_forward.4} parent=0 // pred_check_branch
    %597 = sbr.rel (0) target = $region17
  $region16: #{residual_block_forward.4} parent=0 // pred_region
    %s598 = sadd.s32 0, 0
    %s599 = smul.u32 24, %s598
  $region17: #{residual_block_forward.4} parent=0 // pred_fallthru
    _
  // Predicated region
  $region18: #{residual_block_forward.4} parent=0 // pred_check
    _
  $region19: #{residual_block_forward.4} parent=0 // pred_check_branch
    %601 = sbr.rel (0) target = $region21
  $region20: #{residual_block_forward.4} parent=0 // pred_region
    _
  $region21: #{residual_block_forward.4} parent=0 // pred_fallthru
    _
  // Predicated region
  $region22: #{residual_block_forward.4} parent=0 // pred_check
    _
  $region23: #{residual_block_forward.4} parent=0 // pred_check_branch
    %603 = sbr.rel (0) target = $region25
  $region24: #{residual_block_forward.4} parent=0 // pred_region
    _
  $region25: #{residual_block_forward.4} parent=0 // pred_fallthru
    _
  // Predicated region
  $region26: #{residual_block_forward.4} parent=0 // pred_check
    _
  $region27: #{residual_block_forward.4} parent=0 // pred_check_branch
    %605 = sbr.rel (0) target = $region29
  $region28: #{residual_block_forward.4} parent=0 // pred_region
    %s606 = sadd.s32 0, 0
    %s607 = smul.u32 24, %s606
    %p608 = scmp.lt.s32.totalorder %s607, 23
    %s609 = scalar_select %p608, %s607, 23
    %s610 = smul.addr %s609, 4
    %s611 = scalar_lea.vmem %s2, %s610
  $region29: #{residual_block_forward.4} parent=0 // pred_fallthru
    _
  // Predicated region
  $region30: #{residual_block_forward.4} parent=0 // pred_check
    _
  $region31: #{residual_block_forward.4} parent=0 // pred_check_branch
    %613 = sbr.rel (0) target = $region33
  $region32: #{residual_block_forward.4} parent=0 // pred_region
    _
  $region33: #{residual_block_forward.4} parent=0 // pred_fallthru
    _
  // Predicated region
  $region34: #{residual_block_forward.4} parent=0 // pred_check
    _
  $region35: #{residual_block_forward.4} parent=0 // pred_check_branch
    %615 = sbr.rel (0) target = $region37
  $region36: #{residual_block_forward.4} parent=0 // pred_region
    _
  $region37: #{residual_block_forward.4} parent=0 // pred_fallthru
    _

// kernel: residual_block_forward.7
$region0: #{residual_block_forward.7}
  #allocation0 [shape = 'u32[]', space=smem, size = 0x4, offset = 0x4, fixed_abs, tag = 'smem constant byte address 0x4 - core index']
  #allocation1 [shape = 'u32[144,128]{1,0:T(1,128)}', space=vmem, size = 0x12000, scoped, tag = 'internal scratch']
  %s0 = inlined_call_operand.vmem [shape: bf16[192,8], index: 0, kind: input, shape index: {}]
  %s1 = inlined_call_operand.vmem [shape: f32[1,8], index: 1, kind: input, shape index: {}]
  %s2 = inlined_call_operand.vmem [shape: f32[1,8], index: 2, kind: input, shape index: {}]
  %s3 = inlined_call_operand.vmem [shape: bf16[192,8], index: 3, kind: input, shape index: {}]
  %s4 = inlined_call_operand.vmem [shape: f32[1,8], index: 4, kind: input, shape index: {}]
  %s5 = inlined_call_operand.vmem [shape: f32[1,8], index: 5, kind: input, shape index: {}]
  %s6 = inlined_call_operand.vmem [shape: f32[192,8], index: 6, kind: output, shape index: {}]
  %s7 = sld [smem:[#allocation0]]
  $region34: #{residual_block_forward.7} parent=0
    _
  %s9 = ssub.s32 1, %s7
  %s10 = scalar_select 0, %s9, %s7
  // Predicated region
  $region2: #{residual_block_forward.7} parent=0 // pred_check
    _
  $region3: #{residual_block_forward.7} parent=0 // pred_check_branch
    %12 = sbr.rel (0) target = $region5
  $region4: #{residual_block_forward.7} parent=0 // pred_region
    _
  $region5: #{residual_block_forward.7} parent=0 // pred_fallthru
    _
  // Predicated region
  $region6: #{residual_block_forward.7} parent=0 // pred_check
    _
  $region7: #{residual_block_forward.7} parent=0 // pred_check_branch
    %14 = sbr.rel (0) target = $region9
  $region8: #{residual_block_forward.7} parent=0 // pred_region
    _
  $region9: #{residual_block_forward.7} parent=0 // pred_fallthru
    _
  // Predicated region
  $region10: #{residual_block_forward.7} parent=0 // pred_check
    _
  $region11: #{residual_block_forward.7} parent=0 // pred_check_branch
    %16 = sbr.rel (0) target = $region13
  $region12: #{residual_block_forward.7} parent=0 // pred_region
    _
  $region13: #{residual_block_forward.7} parent=0 // pred_fallthru
    _
  // Predicated region
  $region14: #{residual_block_forward.7} parent=0 // pred_check
    _
  $region15: #{residual_block_forward.7} parent=0 // pred_check_branch
    %18 = sbr.rel (0) target = $region17
  $region16: #{residual_block_forward.7} parent=0 // pred_region
    _
  $region17: #{residual_block_forward.7} parent=0 // pred_fallthru
    _
  // Predicated region
  $region18: #{residual_block_forward.7} parent=0 // pred_check
    _
  $region19: #{residual_block_forward.7} parent=0 // pred_check_branch
    %20 = sbr.rel (0) target = $region21
  $region20: #{residual_block_forward.7} parent=0 // pred_region
    _
  $region21: #{residual_block_forward.7} parent=0 // pred_fallthru
    _
  // Predicated region
  $region22: #{residual_block_forward.7} parent=0 // pred_check
    _
  $region23: #{residual_block_forward.7} parent=0 // pred_check_branch
    %22 = sbr.rel (0) target = $region25
  $region24: #{residual_block_forward.7} parent=0 // pred_region
    _
  $region25: #{residual_block_forward.7} parent=0 // pred_fallthru
    _
  %v23 = vld [vmem:[%s0] sm:$0xf]
  %v24 = vld [vmem:[%s0 + $0x4] sm:$0xf]
  %v25 = vld [vmem:[%s0 + $0x8] sm:$0xf]
  %v26 = vld [vmem:[%s0 + $0xc] sm:$0xf]
  %v27 = vld [vmem:[%s0 + $0x10] sm:$0xf]
  %v28 = vld [vmem:[%s0 + $0x14] sm:$0xf]
  %v29 = vld [vmem:[%s0 + $0x18] sm:$0xf]
  %v30 = vld [vmem:[%s0 + $0x1c] sm:$0xf]
  %v31 = vld [vmem:[%s0 + $0x20] sm:$0xf]
  %v32 = vld [vmem:[%s0 + $0x24] sm:$0xf]
  %v33 = vld [vmem:[%s0 + $0x28] sm:$0xf]
  %v34 = vld [vmem:[%s0 + $0x2c] sm:$0xf]
  %v35 = vld [vmem:[%s0 + $0x30] sm:$0xf]
  %v36 = vld [vmem:[%s0 + $0x34] sm:$0xf]
  %v37 = vld [vmem:[%s0 + $0x38] sm:$0xf]
  %v38 = vld [vmem:[%s0 + $0x3c] sm:$0xf]
  %v39 = vld [vmem:[%s0 + $0x40] sm:$0xf]
  %v40 = vld [vmem:[%s0 + $0x44] sm:$0xf]
  %v41 = vld [vmem:[%s0 + $0x48] sm:$0xf]
  %v42 = vld [vmem:[%s0 + $0x4c] sm:$0xf]
  %v43 = vld [vmem:[%s0 + $0x50] sm:$0xf]
  %v44 = vld [vmem:[%s0 + $0x54] sm:$0xf]
  %v45 = vld [vmem:[%s0 + $0x58] sm:$0xf]
  %v46 = vld [vmem:[%s0 + $0x5c] sm:$0xf]
  %v47 = vunpack.c.l.bf16 %v23
  %v48 = vunpack.c.l.bf16 %v24
  %v49 = vunpack.c.l.bf16 %v25
  %v50 = vunpack.c.l.bf16 %v26
  %v51 = vunpack.c.l.bf16 %v27
  %v52 = vunpack.c.l.bf16 %v28
  %v53 = vunpack.c.l.bf16 %v29
  %v54 = vunpack.c.l.bf16 %v30
  %v55 = vunpack.c.l.bf16 %v31
  %v56 = vunpack.c.l.bf16 %v32
  %v57 = vunpack.c.l.bf16 %v33
  %v58 = vunpack.c.l.bf16 %v34
  %v59 = vunpack.c.l.bf16 %v35
  %v60 = vunpack.c.l.bf16 %v36
  %v61 = vunpack.c.l.bf16 %v37
  %v62 = vunpack.c.l.bf16 %v38
  %v63 = vunpack.c.l.bf16 %v39
  %v64 = vunpack.c.l.bf16 %v40
  %v65 = vunpack.c.l.bf16 %v41
  %v66 = vunpack.c.l.bf16 %v42
  %v67 = vunpack.c.l.bf16 %v43
  %v68 = vunpack.c.l.bf16 %v44
  %v69 = vunpack.c.l.bf16 %v45
  %v70 = vunpack.c.l.bf16 %v46
  %v71 = vld [vmem:[%s1] sm:$0x1]
  %v73 = vlaneseq
  %v74 = vshrl.u32 %v73, 7
  %v75 = vsub.s32 0, %v74
  %v76 = vrot.slane %v71, %v75
  %v78 = vmul.f32 %v47, %v76
  %v79 = vmul.f32 %v48, %v76
  %v80 = vmul.f32 %v49, %v76
  %v81 = vmul.f32 %v50, %v76
  %v82 = vmul.f32 %v51, %v76
  %v83 = vmul.f32 %v52, %v76
  %v84 = vmul.f32 %v53, %v76
  %v85 = vmul.f32 %v54, %v76
  %v86 = vmul.f32 %v55, %v76
  %v87 = vmul.f32 %v56, %v76
  %v88 = vmul.f32 %v57, %v76
  %v89 = vmul.f32 %v58, %v76
  %v90 = vmul.f32 %v59, %v76
  %v91 = vmul.f32 %v60, %v76
  %v92 = vmul.f32 %v61, %v76
  %v93 = vmul.f32 %v62, %v76
  %v94 = vmul.f32 %v63, %v76
  %v95 = vmul.f32 %v64, %v76
  %v96 = vmul.f32 %v65, %v76
  %v97 = vmul.f32 %v66, %v76
  %v98 = vmul.f32 %v67, %v76
  %v99 = vmul.f32 %v68, %v76
  %v100 = vmul.f32 %v69, %v76
  %v101 = vmul.f32 %v70, %v76
  %v102 = vld [vmem:[%s2] sm:$0x1]
  %v104 = vlaneseq
  %v105 = vshrl.u32 %v104, 7
  %v106 = vsub.s32 0, %v105
  %v107 = vrot.slane %v102, %v106
  %v109 = vadd.f32 %v78, %v107
  %v110 = vadd.f32 %v79, %v107
  %v111 = vadd.f32 %v80, %v107
  %v112 = vadd.f32 %v81, %v107
  %v113 = vadd.f32 %v82, %v107
  %v114 = vadd.f32 %v83, %v107
  %v115 = vadd.f32 %v84, %v107
  %v116 = vadd.f32 %v85, %v107
  %v117 = vadd.f32 %v86, %v107
  %v118 = vadd.f32 %v87, %v107
  %v119 = vadd.f32 %v88, %v107
  %v120 = vadd.f32 %v89, %v107
  %v121 = vadd.f32 %v90, %v107
  %v122 = vadd.f32 %v91, %v107
  %v123 = vadd.f32 %v92, %v107
  %v124 = vadd.f32 %v93, %v107
  %v125 = vadd.f32 %v94, %v107
  %v126 = vadd.f32 %v95, %v107
  %v127 = vadd.f32 %v96, %v107
  %v128 = vadd.f32 %v97, %v107
  %v129 = vadd.f32 %v98, %v107
  %v130 = vadd.f32 %v99, %v107
  %v131 = vadd.f32 %v100, %v107
  %v132 = vadd.f32 %v101, %v107
  %v133 = vld [vmem:[%s3] sm:$0xf]
  %v134 = vld [vmem:[%s3 + $0x4] sm:$0xf]
  %v135 = vld [vmem:[%s3 + $0x8] sm:$0xf]
  %v136 = vld [vmem:[%s3 + $0xc] sm:$0xf]
  %v137 = vld [vmem:[%s3 + $0x10] sm:$0xf]
  %v138 = vld [vmem:[%s3 + $0x14] sm:$0xf]
  %v139 = vld [vmem:[%s3 + $0x18] sm:$0xf]
  %v140 = vld [vmem:[%s3 + $0x1c] sm:$0xf]
  %v141 = vld [vmem:[%s3 + $0x20] sm:$0xf]
  %v142 = vld [vmem:[%s3 + $0x24] sm:$0xf]
  %v143 = vld [vmem:[%s3 + $0x28] sm:$0xf]
  %v144 = vld [vmem:[%s3 + $0x2c] sm:$0xf]
  %v145 = vld [vmem:[%s3 + $0x30] sm:$0xf]
  %v146 = vld [vmem:[%s3 + $0x34] sm:$0xf]
  %v147 = vld [vmem:[%s3 + $0x38] sm:$0xf]
  %v148 = vld [vmem:[%s3 + $0x3c] sm:$0xf]
  %v149 = vld [vmem:[%s3 + $0x40] sm:$0xf]
  %v150 = vld [vmem:[%s3 + $0x44] sm:$0xf]
  %v151 = vld [vmem:[%s3 + $0x48] sm:$0xf]
  %v152 = vld [vmem:[%s3 + $0x4c] sm:$0xf]
  %v153 = vld [vmem:[%s3 + $0x50] sm:$0xf]
  %v154 = vld [vmem:[%s3 + $0x54] sm:$0xf]
  %v155 = vld [vmem:[%s3 + $0x58] sm:$0xf]
  %v156 = vld [vmem:[%s3 + $0x5c] sm:$0xf]
  %v157 = vunpack.c.l.bf16 %v133
  %v158 = vunpack.c.l.bf16 %v134
  %v159 = vunpack.c.l.bf16 %v135
  %v160 = vunpack.c.l.bf16 %v136
  %v161 = vunpack.c.l.bf16 %v137
  %v162 = vunpack.c.l.bf16 %v138
  %v163 = vunpack.c.l.bf16 %v139
  %v164 = vunpack.c.l.bf16 %v140
  %v165 = vunpack.c.l.bf16 %v141
  %v166 = vunpack.c.l.bf16 %v142
  %v167 = vunpack.c.l.bf16 %v143
  %v168 = vunpack.c.l.bf16 %v144
  %v169 = vunpack.c.l.bf16 %v145
  %v170 = vunpack.c.l.bf16 %v146
  %v171 = vunpack.c.l.bf16 %v147
  %v172 = vunpack.c.l.bf16 %v148
  %v173 = vunpack.c.l.bf16 %v149
  %v174 = vunpack.c.l.bf16 %v150
  %v175 = vunpack.c.l.bf16 %v151
  %v176 = vunpack.c.l.bf16 %v152
  %v177 = vunpack.c.l.bf16 %v153
  %v178 = vunpack.c.l.bf16 %v154
  %v179 = vunpack.c.l.bf16 %v155
  %v180 = vunpack.c.l.bf16 %v156
  %v181 = vld [vmem:[%s4] sm:$0x1]
  %v183 = vlaneseq
  %v184 = vshrl.u32 %v183, 7
  %v185 = vsub.s32 0, %v184
  %v186 = vrot.slane %v181, %v185
  %v188 = vmul.f32 %v157, %v186
  %v189 = vmul.f32 %v158, %v186
  %v190 = vmul.f32 %v159, %v186
  %v191 = vmul.f32 %v160, %v186
  %v192 = vmul.f32 %v161, %v186
  %v193 = vmul.f32 %v162, %v186
  %v194 = vmul.f32 %v163, %v186
  %v195 = vmul.f32 %v164, %v186
  %v196 = vmul.f32 %v165, %v186
  %v197 = vmul.f32 %v166, %v186
  %v198 = vmul.f32 %v167, %v186
  %v199 = vmul.f32 %v168, %v186
  %v200 = vmul.f32 %v169, %v186
  %v201 = vmul.f32 %v170, %v186
  %v202 = vmul.f32 %v171, %v186
  %v203 = vmul.f32 %v172, %v186
  %v204 = vmul.f32 %v173, %v186
  %v205 = vmul.f32 %v174, %v186
  %v206 = vmul.f32 %v175, %v186
  %v207 = vmul.f32 %v176, %v186
  %v208 = vmul.f32 %v177, %v186
  %v209 = vmul.f32 %v178, %v186
  %v210 = vmul.f32 %v179, %v186
  %v211 = vmul.f32 %v180, %v186
  %v212 = vld [vmem:[%s5] sm:$0x1]
  %v214 = vlaneseq
  %v215 = vshrl.u32 %v214, 7
  %v216 = vsub.s32 0, %v215
  %v217 = vrot.slane %v212, %v216
  %v219 = vadd.f32 %v188, %v217
  %v220 = vadd.f32 %v189, %v217
  %v221 = vadd.f32 %v190, %v217
  %v222 = vadd.f32 %v191, %v217
  %v223 = vadd.f32 %v192, %v217
  %v224 = vadd.f32 %v193, %v217
  %v225 = vadd.f32 %v194, %v217
  %v226 = vadd.f32 %v195, %v217
  %v227 = vadd.f32 %v196, %v217
  %v228 = vadd.f32 %v197, %v217
  %v229 = vadd.f32 %v198, %v217
  %v230 = vadd.f32 %v199, %v217
  %v231 = vadd.f32 %v200, %v217
  %v232 = vadd.f32 %v201, %v217
  %v233 = vadd.f32 %v202, %v217
  %v234 = vadd.f32 %v203, %v217
  %v235 = vadd.f32 %v204, %v217
  %v236 = vadd.f32 %v205, %v217
  %v237 = vadd.f32 %v206, %v217
  %v238 = vadd.f32 %v207, %v217
  %v239 = vadd.f32 %v208, %v217
  %v240 = vadd.f32 %v209, %v217
  %v241 = vadd.f32 %v210, %v217
  %v242 = vadd.f32 %v211, %v217
  %v243 = vadd.f32 %v109, %v219
  %v244 = vadd.f32 %v110, %v220
  %v245 = vadd.f32 %v111, %v221
  %v246 = vadd.f32 %v112, %v222
  %v247 = vadd.f32 %v113, %v223
  %v248 = vadd.f32 %v114, %v224
  %v249 = vadd.f32 %v115, %v225
  %v250 = vadd.f32 %v116, %v226
  %v251 = vadd.f32 %v117, %v227
  %v252 = vadd.f32 %v118, %v228
  %v253 = vadd.f32 %v119, %v229
  %v254 = vadd.f32 %v120, %v230
  %v255 = vadd.f32 %v121, %v231
  %v256 = vadd.f32 %v122, %v232
  %v257 = vadd.f32 %v123, %v233
  %v258 = vadd.f32 %v124, %v234
  %v259 = vadd.f32 %v125, %v235
  %v260 = vadd.f32 %v126, %v236
  %v261 = vadd.f32 %v127, %v237
  %v262 = vadd.f32 %v128, %v238
  %v263 = vadd.f32 %v129, %v239
  %v264 = vadd.f32 %v130, %v240
  %v265 = vadd.f32 %v131, %v241
  %v266 = vadd.f32 %v132, %v242
  %v267 = vmax.f32 %v243, 0.0
  %v268 = vmax.f32 %v244, 0.0
  %v269 = vmax.f32 %v245, 0.0
  %v270 = vmax.f32 %v246, 0.0
  %v271 = vmax.f32 %v247, 0.0
  %v272 = vmax.f32 %v248, 0.0
  %v273 = vmax.f32 %v249, 0.0
  %v274 = vmax.f32 %v250, 0.0
  %v275 = vmax.f32 %v251, 0.0
  %v276 = vmax.f32 %v252, 0.0
  %v277 = vmax.f32 %v253, 0.0
  %v278 = vmax.f32 %v254, 0.0
  %v279 = vmax.f32 %v255, 0.0
  %v280 = vmax.f32 %v256, 0.0
  %v281 = vmax.f32 %v257, 0.0
  %v282 = vmax.f32 %v258, 0.0
  %v283 = vmax.f32 %v259, 0.0
  %v284 = vmax.f32 %v260, 0.0
  %v285 = vmax.f32 %v261, 0.0
  %v286 = vmax.f32 %v262, 0.0
  %v287 = vmax.f32 %v263, 0.0
  %v288 = vmax.f32 %v264, 0.0
  %v289 = vmax.f32 %v265, 0.0
  %v290 = vmax.f32 %v266, 0.0
  %vm291 = vcmask 64512
  %292 = vst.msk [vmem:[%s6] sm:$0xff] %vm291, %v267
  %293 = vst.msk [vmem:[%s6 + $0x8] sm:$0xff] %vm291, %v268
  %294 = vst.msk [vmem:[%s6 + $0x10] sm:$0xff] %vm291, %v269
  %295 = vst.msk [vmem:[%s6 + $0x18] sm:$0xff] %vm291, %v270
  %296 = vst.msk [vmem:[%s6 + $0x20] sm:$0xff] %vm291, %v271
  %297 = vst.msk [vmem:[%s6 + $0x28] sm:$0xff] %vm291, %v272
  %298 = vst.msk [vmem:[%s6 + $0x30] sm:$0xff] %vm291, %v273
  %299 = vst.msk [vmem:[%s6 + $0x38] sm:$0xff] %vm291, %v274
  %300 = vst.msk [vmem:[%s6 + $0x40] sm:$0xff] %vm291, %v275
  %301 = vst.msk [vmem:[%s6 + $0x48] sm:$0xff] %vm291, %v276
  %302 = vst.msk [vmem:[%s6 + $0x50] sm:$0xff] %vm291, %v277
  %303 = vst.msk [vmem:[%s6 + $0x58] sm:$0xff] %vm291, %v278
  %304 = vst.msk [vmem:[%s6 + $0x60] sm:$0xff] %vm291, %v279
  %305 = vst.msk [vmem:[%s6 + $0x68] sm:$0xff] %vm291, %v280
  %306 = vst.msk [vmem:[%s6 + $0x70] sm:$0xff] %vm291, %v281
  %307 = vst.msk [vmem:[%s6 + $0x78] sm:$0xff] %vm291, %v282
  %308 = vst.msk [vmem:[%s6 + $0x80] sm:$0xff] %vm291, %v283
  %309 = vst.msk [vmem:[%s6 + $0x88] sm:$0xff] %vm291, %v284
  %310 = vst.msk [vmem:[%s6 + $0x90] sm:$0xff] %vm291, %v285
  %311 = vst.msk [vmem:[%s6 + $0x98] sm:$0xff] %vm291, %v286
  %312 = vst.msk [vmem:[%s6 + $0xa0] sm:$0xff] %vm291, %v287
  %313 = vst.msk [vmem:[%s6 + $0xa8] sm:$0xff] %vm291, %v288
  %314 = vst.msk [vmem:[%s6 + $0xb0] sm:$0xff] %vm291, %v289
  %315 = vst.msk [vmem:[%s6 + $0xb8] sm:$0xff] %vm291, %v290
  // Predicated region
  $region26: #{residual_block_forward.7} parent=0 // pred_check
    _
  $region27: #{residual_block_forward.7} parent=0 // pred_check_branch
    %317 = sbr.rel (0) target = $region29
  $region28: #{residual_block_forward.7} parent=0 // pred_region
    _
  $region29: #{residual_block_forward.7} parent=0 // pred_fallthru
    _
  // Predicated region
  $region30: #{residual_block_forward.7} parent=0 // pred_check
    _
  $region31: #{residual_block_forward.7} parent=0 // pred_check_branch
    %319 = sbr.rel (0) target = $region33
  $region32: #{residual_block_forward.7} parent=0 // pred_region
    _
  $region33: #{residual_block_forward.7} parent=0 // pred_fallthru
    _

// kernel: residual_block_forward.6
$region0: #{residual_block_forward.6}
  #allocation0 [shape = 'u32[]', space=smem, size = 0x4, offset = 0x4, fixed_abs, tag = 'smem constant byte address 0x4 - core index']
  #allocation1 [shape = 'u32[144,128]{1,0:T(1,128)}', space=vmem, size = 0x12000, scoped, tag = 'internal scratch']
  %s0 = inlined_call_operand.vmem [shape: bf16[192,72], index: 0, kind: input, shape index: {}]
  %s1 = inlined_call_operand.vmem [shape: bf16[72,8], index: 1, kind: input, shape index: {}]
  %s2 = inlined_call_operand.vmem [shape: bf16[192,4], index: 2, kind: input, shape index: {}]
  %s3 = inlined_call_operand.vmem [shape: bf16[4,8], index: 3, kind: input, shape index: {}]
  %s4 = inlined_call_operand.vmem [shape: bf16[192,8], index: 4, kind: output, shape index: {0}]
  %s5 = inlined_call_operand.vmem [shape: f32[8,8], index: 5, kind: output, shape index: {1}]
  %s6 = inlined_call_operand.vmem [shape: f32[8,8], index: 6, kind: output, shape index: {2}]
  %s7 = inlined_call_operand.vmem [shape: bf16[192,8], index: 7, kind: output, shape index: {3}]
  %s8 = inlined_call_operand.vmem [shape: f32[8,8], index: 8, kind: output, shape index: {4}]
  %s9 = inlined_call_operand.vmem [shape: f32[8,8], index: 9, kind: output, shape index: {5}]
  %10 = xla_tuple %s4, %s5, %s6, %s7, %s8, %s9
  %s11 = sld [smem:[#allocation0]]
  $region70: #{residual_block_forward.6} parent=0
    _
  %s13 = ssub.s32 1, %s11
  %s14 = scalar_select 0, %s13, %s11
  // Predicated region
  $region2: #{residual_block_forward.6} parent=0 // pred_check
    _
  $region3: #{residual_block_forward.6} parent=0 // pred_check_branch
    %16 = sbr.rel (0) target = $region5
  $region4: #{residual_block_forward.6} parent=0 // pred_region
    %s17 = sadd.s32 0, 0
    %s18 = smul.u32 24, %s17
    %p19 = scmp.lt.s32.totalorder %s18, 23
    %s20 = scalar_select %p19, %s18, 23
    %s21 = smul.addr %s20, 4
    %s22 = scalar_lea.vmem %s0, %s21
    %s23 = sadd.s32 0, 0
    %s24 = smul.u32 24, %s23
  $region5: #{residual_block_forward.6} parent=0 // pred_fallthru
    _
  // Predicated region
  $region6: #{residual_block_forward.6} parent=0 // pred_check
    _
  $region7: #{residual_block_forward.6} parent=0 // pred_check_branch
    %26 = sbr.rel (0) target = $region9
  $region8: #{residual_block_forward.6} parent=0 // pred_region
    _
  $region9: #{residual_block_forward.6} parent=0 // pred_fallthru
    _
  // Predicated region
  $region10: #{residual_block_forward.6} parent=0 // pred_check
    _
  $region11: #{residual_block_forward.6} parent=0 // pred_check_branch
    %28 = sbr.rel (0) target = $region13
  $region12: #{residual_block_forward.6} parent=0 // pred_region
    %s29 = sadd.s32 0, 0
    %s30 = smul.u32 24, %s29
    %p31 = scmp.lt.s32.totalorder %s30, 23
    %s32 = scalar_select %p31, %s30, 23
    %s33 = smul.addr %s32, 4
    %s34 = scalar_lea.vmem %s2, %s33
    %s35 = sadd.s32 0, 0
    %s36 = smul.u32 24, %s35
  $region13: #{residual_block_forward.6} parent=0 // pred_fallthru
    _
  // Predicated region
  $region14: #{residual_block_forward.6} parent=0 // pred_check
    _
  $region15: #{residual_block_forward.6} parent=0 // pred_check_branch
    %38 = sbr.rel (0) target = $region17
  $region16: #{residual_block_forward.6} parent=0 // pred_region
    _
  $region17: #{residual_block_forward.6} parent=0 // pred_fallthru
    _
  %s39 = sadd.s32 0, 0
  %s40 = smul.u32 24, %s39
  %p41 = scmp.lt.s32.totalorder %s40, 23
  %s42 = scalar_select %p41, %s40, 23
  %s43 = smul.addr %s42, 4
  %s44 = scalar_lea.vmem %s0, %s43
  %s45 = sadd.s32 0, 0
  %s46 = smul.u32 24, %s45
  %p47 = scmp.lt.s32.totalorder %s46, 23
  %s48 = scalar_select %p47, %s46, 23
  %s49 = smul.addr %s48, 4
  %s50 = scalar_lea.vmem %s2, %s49
  %s51 = sadd.s32 0, 0
  %s52 = smul.u32 24, %s51
  %p53 = scmp.lt.s32.totalorder %s52, 23
  %s54 = scalar_select %p53, %s52, 23
  %s55 = smul.addr %s54, 4
  %s56 = scalar_lea.vmem %s4, %s55
  %s57 = sadd.s32 0, 0
  %s58 = smul.u32 24, %s57
  %p59 = scmp.lt.s32.totalorder %s58, 23
  %s60 = scalar_select %p59, %s58, 23
  %s61 = smul.addr %s60, 4
  %s62 = scalar_lea.vmem %s7, %s61
  %s63 = sadd.s32 0, 0
  %s64 = smul.u32 24, %s63
  %p65 = scmp.lt.s32.totalorder %s64, 23
  %s66 = scalar_select %p65, %s64, 23
  %s67 = smul.addr %s66, 4
  %s68 = scalar_lea.vmem %s0, %s67
  %s69 = sadd.s32 0, 0
  %s70 = smul.u32 24, %s69
  %s71 = sadd.s32 0, 0
  %s72 = smul.u32 24, %s71
  %p73 = scmp.lt.s32.totalorder %s72, 23
  %s74 = scalar_select %p73, %s72, 23
  %s75 = smul.addr %s74, 4
  %s76 = scalar_lea.vmem %s2, %s75
  %s77 = sadd.s32 0, 0
  %s78 = smul.u32 24, %s77
  %s79 = sadd.s32 0, 0
  %s80 = smul.u32 24, %s79
  %p81 = scmp.lt.s32.totalorder %s80, 23
  %s82 = scalar_select %p81, %s80, 23
  %s83 = smul.addr %s82, 4
  %s84 = scalar_lea.vmem %s4, %s83
  %s85 = sadd.s32 0, 0
  %s86 = smul.u32 24, %s85
  %s87 = sadd.s32 0, 0
  %s88 = smul.u32 24, %s87
  %p89 = scmp.lt.s32.totalorder %s88, 23
  %s90 = scalar_select %p89, %s88, 23
  %s91 = smul.addr %s90, 4
  %s92 = scalar_lea.vmem %s7, %s91
  %s93 = sadd.s32 0, 0
  %s94 = smul.u32 24, %s93
  %p96 = scmp.eq.s32.totalorder 0, 0
  // Predicated region
  $region18: #{residual_block_forward.6} parent=0 // pred_check
    %p97 = pneg %p96
  $region19: #{residual_block_forward.6} parent=0 // pred_check_branch
    %99 = sbr.rel (%p97) target = $region21
  $region20: #{residual_block_forward.6} parent=0 // pred_region
    %vm100 = vcmask 64512
    %101 = vst.msk [vmem:[%s5] sm:$0xff] %vm100, 0.0
    %102 = vst.msk [vmem:[%s6] sm:$0xff] %vm100, 0.0
    %103 = vst.msk [vmem:[%s8] sm:$0xff] %vm100, 0.0
    %104 = vst.msk [vmem:[%s9] sm:$0xff] %vm100, 0.0
  $region21: #{residual_block_forward.6} parent=0 // pred_fallthru
    _
  %v105 = vld [vmem:[%s68] sm:$0xf]
  %v106 = vld [vmem:[%s68 + $0x4] sm:$0xf]
  %v107 = vld [vmem:[%s68 + $0x8] sm:$0xf]
  %v108 = vld [vmem:[%s68 + $0xc] sm:$0xf]
  %v109 = vld [vmem:[%s68 + $0x10] sm:$0xf]
  %v110 = vld [vmem:[%s68 + $0x14] sm:$0xf]
  %v111 = vld [vmem:[%s68 + $0x18] sm:$0xf]
  %v112 = vld [vmem:[%s68 + $0x1c] sm:$0xf]
  %v113 = vld [vmem:[%s68 + $0x20] sm:$0xf]
  %v114 = vld [vmem:[%s68 + $0x24] sm:$0xf]
  %v115 = vld [vmem:[%s68 + $0x28] sm:$0xf]
  %v116 = vld [vmem:[%s68 + $0x2c] sm:$0xf]
  %v117 = vld [vmem:[%s68 + $0x30] sm:$0xf]
  %v118 = vld [vmem:[%s68 + $0x34] sm:$0xf]
  %v119 = vld [vmem:[%s68 + $0x38] sm:$0xf]
  %v120 = vld [vmem:[%s68 + $0x3c] sm:$0xf]
  %v121 = vld [vmem:[%s68 + $0x40] sm:$0xf]
  %v122 = vld [vmem:[%s68 + $0x44] sm:$0xf]
  %v123 = vld [vmem:[%s68 + $0x48] sm:$0xf]
  %v124 = vld [vmem:[%s68 + $0x4c] sm:$0xf]
  %v125 = vld [vmem:[%s68 + $0x50] sm:$0xf]
  %v126 = vld [vmem:[%s68 + $0x54] sm:$0xf]
  %v127 = vld [vmem:[%s68 + $0x58] sm:$0xf]
  %v128 = vld [vmem:[%s68 + $0x5c] sm:$0xf]
  %v129 = vld [vmem:[%s1] sm:$0xf]
  %v130 = vld [vmem:[%s1 + $0x4] sm:$0xf]
  %v131 = vld [vmem:[%s1 + $0x8] sm:$0xf]
  %v132 = vld [vmem:[%s1 + $0xc] sm:$0xf]
  %v133 = vld [vmem:[%s1 + $0x10] sm:$0xf]
  %v134 = vld [vmem:[%s1 + $0x14] sm:$0xf]
  %v135 = vld [vmem:[%s1 + $0x18] sm:$0xf]
  %v136 = vld [vmem:[%s1 + $0x1c] sm:$0xf]
  %v137 = vld [vmem:[%s1 + $0x20] sm:$0xf]
  %v162 = vunpack.c.l.b16 %v105
  %v163 = vunpack.c.l.b16 %v106
  %v164 = vunpack.c.l.b16 %v107
  %v165 = vunpack.c.l.b16 %v108
  %v166 = vunpack.c.l.b16 %v109
  %v167 = vunpack.c.l.b16 %v110
  %v168 = vunpack.c.l.b16 %v111
  %v169 = vunpack.c.l.b16 %v112
  %v170 = vunpack.c.l.b16 %v113
  %v171 = vunpack.c.l.b16 %v114
  %v172 = vunpack.c.l.b16 %v115
  %v173 = vunpack.c.l.b16 %v116
  %v174 = vunpack.c.l.b16 %v117
  %v175 = vunpack.c.l.b16 %v118
  %v176 = vunpack.c.l.b16 %v119
  %v177 = vunpack.c.l.b16 %v120
  %v178 = vunpack.c.l.b16 %v121
  %v179 = vunpack.c.l.b16 %v122
  %v180 = vunpack.c.l.b16 %v123
  %v181 = vunpack.c.l.b16 %v124
  %v182 = vunpack.c.l.b16 %v125
  %v183 = vunpack.c.l.b16 %v126
  %v184 = vunpack.c.l.b16 %v127
  %v185 = vunpack.c.l.b16 %v128
  %v186 = vpack.c.b16 %v163, %v162
  %v187 = vpack.c.b16 %v165, %v164
  %v188 = vpack.c.b16 %v167, %v166
  %v189 = vpack.c.b16 %v169, %v168
  %v190 = vpack.c.b16 %v171, %v170
  %v191 = vpack.c.b16 %v173, %v172
  %v192 = vpack.c.b16 %v175, %v174
  %v193 = vpack.c.b16 %v177, %v176
  %v194 = vpack.c.b16 %v179, %v178
  %v195 = vpack.c.b16 %v181, %v180
  %v196 = vpack.c.b16 %v183, %v182
  %v197 = vpack.c.b16 %v185, %v184
  %v207 = vunpack.c.l.b16 %v129
  %v208 = vunpack.c.l.b16 %v130
  %v209 = vunpack.c.l.b16 %v131
  %v210 = vunpack.c.l.b16 %v132
  %v211 = vunpack.c.l.b16 %v133
  %v212 = vunpack.c.l.b16 %v134
  %v213 = vunpack.c.l.b16 %v135
  %v214 = vunpack.c.l.b16 %v136
  %v215 = vunpack.c.l.b16 %v137
  %v216 = vpack.c.b16 %v208, %v207
  %v217 = vpack.c.b16 %v210, %v209
  %v218 = vpack.c.b16 %v212, %v211
  %v219 = vpack.c.b16 %v214, %v213
  %v220 = vpack.c.b16 %v215, %v215
  %vm225 = vcmask 588800
  %v227 = vsel %vm225, %v186, 0
  %v230 = vsel %vm225, %v187, 0
  %v233 = vsel %vm225, %v188, 0
  %v236 = vsel %vm225, %v189, 0
  %v239 = vsel %vm225, %v190, 0
  %v242 = vsel %vm225, %v191, 0
  %v245 = vsel %vm225, %v192, 0
  %v248 = vsel %vm225, %v193, 0
  %v251 = vsel %vm225, %v194, 0
  %v254 = vsel %vm225, %v195, 0
  %v257 = vsel %vm225, %v196, 0
  %v260 = vsel %vm225, %v197, 0
  %vm262 = vcmask 1043456
  %v264 = vsel %vm262, %v220, 0
  %266 = vmatprep.subr.bf16.mxu0 0
  %267 = vmatpush1.bf16.msra.mxu0 0
  %268 = vmatprep.subr.bf16.mxu0 0
  %269 = vmatpush1.bf16.msra.mxu0 0
  %270 = vmatprep.subr.bf16.mxu0 0
  %271 = vmatpush1.bf16.msra.mxu0 0
  %272 = vmatprep.subr.bf16.mxu0 0
  %273 = vmatpush1.bf16.msra.mxu0 %v264
  %274 = vmatprep.subr.bf16.mxu0 0
  %275 = vmatpush1.bf16.msra.mxu0 %v219
  %276 = vmatprep.subr.bf16.mxu0 0
  %277 = vmatpush1.bf16.msra.mxu0 %v218
  %278 = vmatprep.subr.bf16.mxu0 0
  %279 = vmatpush1.bf16.msra.mxu0 %v217
  %280 = vmatprep.subr.bf16.mxu0 0
  %281 = vmatpush1.bf16.msra.mxu0 %v216
  %282 = vmatprep.subr.bf16.mxu0 0
  %283 = vmatpush2.bf16.msra.mxu0 0
  %284 = vmatprep.subr.bf16.mxu0 0
  %285 = vmatpush2.bf16.msra.mxu0 0
  %286 = vmatprep.subr.bf16.mxu0 0
  %287 = vmatpush2.bf16.msra.mxu0 0
  %288 = vmatprep.subr.bf16.mxu0 0
  %289 = vmatpush2.bf16.msra.mxu0 0
  %290 = vmatprep.subr.bf16.mxu0 0
  %291 = vmatpush2.bf16.msra.mxu0 0
  %292 = vmatprep.subr.bf16.mxu0 0
  %293 = vmatpush2.bf16.msra.mxu0 0
  %294 = vmatprep.subr.bf16.mxu0 0
  %295 = vmatpush2.bf16.msra.mxu0 0
  %296 = vmatprep.subr.bf16.mxu0 0
  %297 = vmatpush2.bf16.msra.mxu0 0
  %298 = vmatprep.mubr.bf16.mxu0 0
  %299 = vmatmul.mubr.bf16.gmra.mxu0 %v227
  %v300 = vpop.f32.mrf.mxu0
  %v301 = vadd.f32 0.0, %v300
  %v302 = vpop.f32.mrf.mxu0
  %v303 = vpop.f32.mrf.mxu0
  %v304 = vadd.f32 0.0, %v303
  %v305 = vpop.f32.mrf.mxu0
  %306 = vmatprep.mubr.bf16.mxu0 0
  %307 = vmatmul.mubr.bf16.gmra.mxu0 %v230
  %v308 = vpop.f32.mrf.mxu0
  %v309 = vadd.f32 0.0, %v308
  %v310 = vpop.f32.mrf.mxu0
  %v311 = vpop.f32.mrf.mxu0
  %v312 = vadd.f32 0.0, %v311
  %v313 = vpop.f32.mrf.mxu0
  %314 = vmatprep.mubr.bf16.mxu0 0
  %315 = vmatmul.mubr.bf16.gmra.mxu0 %v233
  %v316 = vpop.f32.mrf.mxu0
  %v317 = vadd.f32 0.0, %v316
  %v318 = vpop.f32.mrf.mxu0
  %v319 = vpop.f32.mrf.mxu0
  %v320 = vadd.f32 0.0, %v319
  %v321 = vpop.f32.mrf.mxu0
  %322 = vmatprep.mubr.bf16.mxu0 0
  %323 = vmatmul.mubr.bf16.gmra.mxu0 %v236
  %v324 = vpop.f32.mrf.mxu0
  %v325 = vadd.f32 0.0, %v324
  %v326 = vpop.f32.mrf.mxu0
  %v327 = vpop.f32.mrf.mxu0
  %v328 = vadd.f32 0.0, %v327
  %v329 = vpop.f32.mrf.mxu0
  %330 = vmatprep.mubr.bf16.mxu0 0
  %331 = vmatmul.mubr.bf16.gmra.mxu0 %v239
  %v332 = vpop.f32.mrf.mxu0
  %v333 = vadd.f32 0.0, %v332
  %v334 = vpop.f32.mrf.mxu0
  %v335 = vpop.f32.mrf.mxu0
  %v336 = vadd.f32 0.0, %v335
  %v337 = vpop.f32.mrf.mxu0
  %338 = vmatprep.mubr.bf16.mxu0 0
  %339 = vmatmul.mubr.bf16.gmra.mxu0 %v242
  %v340 = vpop.f32.mrf.mxu0
  %v341 = vadd.f32 0.0, %v340
  %v342 = vpop.f32.mrf.mxu0
  %v343 = vpop.f32.mrf.mxu0
  %v344 = vadd.f32 0.0, %v343
  %v345 = vpop.f32.mrf.mxu0
  %346 = vmatprep.mubr.bf16.mxu0 0
  %347 = vmatmul.mubr.bf16.gmra.mxu0 %v245
  %v348 = vpop.f32.mrf.mxu0
  %v349 = vadd.f32 0.0, %v348
  %v350 = vpop.f32.mrf.mxu0
  %v351 = vpop.f32.mrf.mxu0
  %v352 = vadd.f32 0.0, %v351
  %v353 = vpop.f32.mrf.mxu0
  %354 = vmatprep.mubr.bf16.mxu0 0
  %355 = vmatmul.mubr.bf16.gmra.mxu0 %v248
  %v356 = vpop.f32.mrf.mxu0
  %v357 = vadd.f32 0.0, %v356
  %v358 = vpop.f32.mrf.mxu0
  %v359 = vpop.f32.mrf.mxu0
  %v360 = vadd.f32 0.0, %v359
  %v361 = vpop.f32.mrf.mxu0
  %362 = vmatprep.mubr.bf16.mxu0 0
  %363 = vmatmul.mubr.bf16.gmra.mxu0 %v251
  %v364 = vpop.f32.mrf.mxu0
  %v365 = vadd.f32 0.0, %v364
  %v366 = vpop.f32.mrf.mxu0
  %v367 = vpop.f32.mrf.mxu0
  %v368 = vadd.f32 0.0, %v367
  %v369 = vpop.f32.mrf.mxu0
  %370 = vmatprep.mubr.bf16.mxu0 0
  %371 = vmatmul.mubr.bf16.gmra.mxu0 %v254
  %v372 = vpop.f32.mrf.mxu0
  %v373 = vadd.f32 0.0, %v372
  %v374 = vpop.f32.mrf.mxu0
  %v375 = vpop.f32.mrf.mxu0
  %v376 = vadd.f32 0.0, %v375
  %v377 = vpop.f32.mrf.mxu0
  %378 = vmatprep.mubr.bf16.mxu0 0
  %379 = vmatmul.mubr.bf16.gmra.mxu0 %v257
  %v380 = vpop.f32.mrf.mxu0
  %v381 = vadd.f32 0.0, %v380
  %v382 = vpop.f32.mrf.mxu0
  %v383 = vpop.f32.mrf.mxu0
  %v384 = vadd.f32 0.0, %v383
  %v385 = vpop.f32.mrf.mxu0
  %386 = vmatprep.mubr.bf16.mxu0 0
  %387 = vmatmul.mubr.bf16.gmra.mxu0 %v260
  %v388 = vpop.f32.mrf.mxu0
  %v389 = vadd.f32 0.0, %v388
  %v390 = vpop.f32.mrf.mxu0
  %v391 = vpop.f32.mrf.mxu0
  %v392 = vadd.f32 0.0, %v391
  %v393 = vpop.f32.mrf.mxu0
  %394 = vdwg.mxu0
  %v395 = vpack.c.bf16 %v304, %v301
  %v396 = vpack.c.bf16 %v312, %v309
  %v397 = vpack.c.bf16 %v320, %v317
  %v398 = vpack.c.bf16 %v328, %v325
  %v399 = vpack.c.bf16 %v336, %v333
  %v400 = vpack.c.bf16 %v344, %v341
  %v401 = vpack.c.bf16 %v352, %v349
  %v402 = vpack.c.bf16 %v360, %v357
  %v403 = vpack.c.bf16 %v368, %v365
  %v404 = vpack.c.bf16 %v376, %v373
  %v405 = vpack.c.bf16 %v384, %v381
  %v406 = vpack.c.bf16 %v392, %v389
  %v419 = vunpack.c.l.b16 %v395
  %v420 = vunpack.c.h.b16 %v395
  %v421 = vunpack.c.l.b16 %v396
  %v422 = vunpack.c.h.b16 %v396
  %v423 = vunpack.c.l.b16 %v397
  %v424 = vunpack.c.h.b16 %v397
  %v425 = vunpack.c.l.b16 %v398
  %v426 = vunpack.c.h.b16 %v398
  %v427 = vunpack.c.l.b16 %v399
  %v428 = vunpack.c.h.b16 %v399
  %v429 = vunpack.c.l.b16 %v400
  %v430 = vunpack.c.h.b16 %v400
  %v431 = vunpack.c.l.b16 %v401
  %v432 = vunpack.c.h.b16 %v401
  %v433 = vunpack.c.l.b16 %v402
  %v434 = vunpack.c.h.b16 %v402
  %v435 = vunpack.c.l.b16 %v403
  %v436 = vunpack.c.h.b16 %v403
  %v437 = vunpack.c.l.b16 %v404
  %v438 = vunpack.c.h.b16 %v404
  %v439 = vunpack.c.l.b16 %v405
  %v440 = vunpack.c.h.b16 %v405
  %v441 = vunpack.c.l.b16 %v406
  %v442 = vunpack.c.h.b16 %v406
  %v443 = vpack.c.b16 %v419, %v419
  %v444 = vpack.c.b16 %v420, %v420
  %v445 = vpack.c.b16 %v421, %v421
  %v446 = vpack.c.b16 %v422, %v422
  %v447 = vpack.c.b16 %v423, %v423
  %v448 = vpack.c.b16 %v424, %v424
  %v449 = vpack.c.b16 %v425, %v425
  %v450 = vpack.c.b16 %v426, %v426
  %v451 = vpack.c.b16 %v427, %v427
  %v452 = vpack.c.b16 %v428, %v428
  %v453 = vpack.c.b16 %v429, %v429
  %v454 = vpack.c.b16 %v430, %v430
  %v455 = vpack.c.b16 %v431, %v431
  %v456 = vpack.c.b16 %v432, %v432
  %v457 = vpack.c.b16 %v433, %v433
  %v458 = vpack.c.b16 %v434, %v434
  %v459 = vpack.c.b16 %v435, %v435
  %v460 = vpack.c.b16 %v436, %v436
  %v461 = vpack.c.b16 %v437, %v437
  %v462 = vpack.c.b16 %v438, %v438
  %v463 = vpack.c.b16 %v439, %v439
  %v464 = vpack.c.b16 %v440, %v440
  %v465 = vpack.c.b16 %v441, %v441
  %v466 = vpack.c.b16 %v442, %v442
  %vm491 = vcmask 60416
  %492 = vst.msk [vmem:[%s84] sm:$0xf] %vm491, %v443
  %493 = vst.msk [vmem:[%s84 + $0x4] sm:$0xf] %vm491, %v444
  %494 = vst.msk [vmem:[%s84 + $0x8] sm:$0xf] %vm491, %v445
  %495 = vst.msk [vmem:[%s84 + $0xc] sm:$0xf] %vm491, %v446
  %496 = vst.msk [vmem:[%s84 + $0x10] sm:$0xf] %vm491, %v447
  %497 = vst.msk [vmem:[%s84 + $0x14] sm:$0xf] %vm491, %v448
  %498 = vst.msk [vmem:[%s84 + $0x18] sm:$0xf] %vm491, %v449
  %499 = vst.msk [vmem:[%s84 + $0x1c] sm:$0xf] %vm491, %v450
  %500 = vst.msk [vmem:[%s84 + $0x20] sm:$0xf] %vm491, %v451
  %501 = vst.msk [vmem:[%s84 + $0x24] sm:$0xf] %vm491, %v452
  %502 = vst.msk [vmem:[%s84 + $0x28] sm:$0xf] %vm491, %v453
  %503 = vst.msk [vmem:[%s84 + $0x2c] sm:$0xf] %vm491, %v454
  %504 = vst.msk [vmem:[%s84 + $0x30] sm:$0xf] %vm491, %v455
  %505 = vst.msk [vmem:[%s84 + $0x34] sm:$0xf] %vm491, %v456
  %506 = vst.msk [vmem:[%s84 + $0x38] sm:$0xf] %vm491, %v457
  %507 = vst.msk [vmem:[%s84 + $0x3c] sm:$0xf] %vm491, %v458
  %508 = vst.msk [vmem:[%s84 + $0x40] sm:$0xf] %vm491, %v459
  %509 = vst.msk [vmem:[%s84 + $0x44] sm:$0xf] %vm491, %v460
  %510 = vst.msk [vmem:[%s84 + $0x48] sm:$0xf] %vm491, %v461
  %511 = vst.msk [vmem:[%s84 + $0x4c] sm:$0xf] %vm491, %v462
  %512 = vst.msk [vmem:[%s84 + $0x50] sm:$0xf] %vm491, %v463
  %513 = vst.msk [vmem:[%s84 + $0x54] sm:$0xf] %vm491, %v464
  %514 = vst.msk [vmem:[%s84 + $0x58] sm:$0xf] %vm491, %v465
  %515 = vst.msk [vmem:[%s84 + $0x5c] sm:$0xf] %vm491, %v466
  %v516 = vld [vmem:[%s5] sm:$0xff]
  %vm517 = vcmask 64512
  %v518 = vsel %vm517, %v301, 0.0
  %v519 = vsel %vm517, %v304, 0.0
  %v520 = vadd.f32 %v518, %v519
  %v521 = vsel %vm517, %v309, 0.0
  %v522 = vadd.f32 %v520, %v521
  %v523 = vsel %vm517, %v312, 0.0
  %v524 = vadd.f32 %v522, %v523
  %v525 = vsel %vm517, %v317, 0.0
  %v526 = vadd.f32 %v524, %v525
  %v527 = vsel %vm517, %v320, 0.0
  %v528 = vadd.f32 %v526, %v527
  %v529 = vsel %vm517, %v325, 0.0
  %v530 = vadd.f32 %v528, %v529
  %v531 = vsel %vm517, %v328, 0.0
  %v532 = vadd.f32 %v530, %v531
  %v533 = vsel %vm517, %v333, 0.0
  %v534 = vadd.f32 %v532, %v533
  %v535 = vsel %vm517, %v336, 0.0
  %v536 = vadd.f32 %v534, %v535
  %v537 = vsel %vm517, %v341, 0.0
  %v538 = vadd.f32 %v536, %v537
  %v539 = vsel %vm517, %v344, 0.0
  %v540 = vadd.f32 %v538, %v539
  %v541 = vsel %vm517, %v349, 0.0
  %v542 = vadd.f32 %v540, %v541
  %v543 = vsel %vm517, %v352, 0.0
  %v544 = vadd.f32 %v542, %v543
  %v545 = vsel %vm517, %v357, 0.0
  %v546 = vadd.f32 %v544, %v545
  %v547 = vsel %vm517, %v360, 0.0
  %v548 = vadd.f32 %v546, %v547
  %v549 = vsel %vm517, %v365, 0.0
  %v550 = vadd.f32 %v548, %v549
  %v551 = vsel %vm517, %v368, 0.0
  %v552 = vadd.f32 %v550, %v551
  %v553 = vsel %vm517, %v373, 0.0
  %v554 = vadd.f32 %v552, %v553
  %v555 = vsel %vm517, %v376, 0.0
  %v556 = vadd.f32 %v554, %v555
  %v557 = vsel %vm517, %v381, 0.0
  %v558 = vadd.f32 %v556, %v557
  %v559 = vsel %vm517, %v384, 0.0
  %v560 = vadd.f32 %v558, %v559
  %v561 = vsel %vm517, %v389, 0.0
  %v562 = vadd.f32 %v560, %v561
  %v563 = vsel %vm517, %v392, 0.0
  %v564 = vadd.f32 %v562, %v563
  %v565 = vrot.slane %v564, 4
  %v566 = vadd.f32 %v564, %v565
  %v567 = vrot.slane %v566, 2
  %v568 = vadd.f32 %v566, %v567
  %v569 = vrot.slane %v568, 1
  %v570 = vadd.f32 %v568, %v569
  %v571 = vadd.f32 %v516, %v570
  %572 = vst.msk [vmem:[%s5] sm:$0xff] %vm517, %v571
  %v573 = vld [vmem:[%s6] sm:$0xff]
  %v574 = vmul.f32 %v301, %v301
  %v575 = vmul.f32 %v304, %v304
  %v576 = vmul.f32 %v309, %v309
  %v577 = vmul.f32 %v312, %v312
  %v578 = vmul.f32 %v317, %v317
  %v579 = vmul.f32 %v320, %v320
  %v580 = vmul.f32 %v325, %v325
  %v581 = vmul.f32 %v328, %v328
  %v582 = vmul.f32 %v333, %v333
  %v583 = vmul.f32 %v336, %v336
  %v584 = vmul.f32 %v341, %v341
  %v585 = vmul.f32 %v344, %v344
  %v586 = vmul.f32 %v349, %v349
  %v587 = vmul.f32 %v352, %v352
  %v588 = vmul.f32 %v357, %v357
  %v589 = vmul.f32 %v360, %v360
  %v590 = vmul.f32 %v365, %v365
  %v591 = vmul.f32 %v368, %v368
  %v592 = vmul.f32 %v373, %v373
  %v593 = vmul.f32 %v376, %v376
  %v594 = vmul.f32 %v381, %v381
  %v595 = vmul.f32 %v384, %v384
  %v596 = vmul.f32 %v389, %v389
  %v597 = vmul.f32 %v392, %v392
  %v598 = vsel %vm517, %v574, 0.0
  %v599 = vsel %vm517, %v575, 0.0
  %v600 = vadd.f32 %v598, %v599
  %v601 = vsel %vm517, %v576, 0.0
  %v602 = vadd.f32 %v600, %v601
  %v603 = vsel %vm517, %v577, 0.0
  %v604 = vadd.f32 %v602, %v603
  %v605 = vsel %vm517, %v578, 0.0
  %v606 = vadd.f32 %v604, %v605
  %v607 = vsel %vm517, %v579, 0.0
  %v608 = vadd.f32 %v606, %v607
  %v609 = vsel %vm517, %v580, 0.0
  %v610 = vadd.f32 %v608, %v609
  %v611 = vsel %vm517, %v581, 0.0
  %v612 = vadd.f32 %v610, %v611
  %v613 = vsel %vm517, %v582, 0.0
  %v614 = vadd.f32 %v612, %v613
  %v615 = vsel %vm517, %v583, 0.0
  %v616 = vadd.f32 %v614, %v615
  %v617 = vsel %vm517, %v584, 0.0
  %v618 = vadd.f32 %v616, %v617
  %v619 = vsel %vm517, %v585, 0.0
  %v620 = vadd.f32 %v618, %v619
  %v621 = vsel %vm517, %v586, 0.0
  %v622 = vadd.f32 %v620, %v621
  %v623 = vsel %vm517, %v587, 0.0
  %v624 = vadd.f32 %v622, %v623
  %v625 = vsel %vm517, %v588, 0.0
  %v626 = vadd.f32 %v624, %v625
  %v627 = vsel %vm517, %v589, 0.0
  %v628 = vadd.f32 %v626, %v627
  %v629 = vsel %vm517, %v590, 0.0
  %v630 = vadd.f32 %v628, %v629
  %v631 = vsel %vm517, %v591, 0.0
  %v632 = vadd.f32 %v630, %v631
  %v633 = vsel %vm517, %v592, 0.0
  %v634 = vadd.f32 %v632, %v633
  %v635 = vsel %vm517, %v593, 0.0
  %v636 = vadd.f32 %v634, %v635
  %v637 = vsel %vm517, %v594, 0.0
  %v638 = vadd.f32 %v636, %v637
  %v639 = vsel %vm517, %v595, 0.0
  %v640 = vadd.f32 %v638, %v639
  %v641 = vsel %vm517, %v596, 0.0
  %v642 = vadd.f32 %v640, %v641
  %v643 = vsel %vm517, %v597, 0.0
  %v644 = vadd.f32 %v642, %v643
  %v645 = vrot.slane %v644, 4
  %v646 = vadd.f32 %v644, %v645
  %v647 = vrot.slane %v646, 2
  %v648 = vadd.f32 %v646, %v647
  %v649 = vrot.slane %v648, 1
  %v650 = vadd.f32 %v648, %v649
  %v651 = vadd.f32 %v573, %v650
  %652 = vst.msk [vmem:[%s6] sm:$0xff] %vm517, %v651
  %v653 = vld [vmem:[%s76] sm:$0xf]
  %v654 = vld [vmem:[%s76 + $0x4] sm:$0xf]
  %v655 = vld [vmem:[%s76 + $0x8] sm:$0xf]
  %v656 = vld [vmem:[%s76 + $0xc] sm:$0xf]
  %v657 = vld [vmem:[%s76 + $0x10] sm:$0xf]
  %v658 = vld [vmem:[%s76 + $0x14] sm:$0xf]
  %v659 = vld [vmem:[%s76 + $0x18] sm:$0xf]
  %v660 = vld [vmem:[%s76 + $0x1c] sm:$0xf]
  %v661 = vld [vmem:[%s76 + $0x20] sm:$0xf]
  %v662 = vld [vmem:[%s76 + $0x24] sm:$0xf]
  %v663 = vld [vmem:[%s76 + $0x28] sm:$0xf]
  %v664 = vld [vmem:[%s76 + $0x2c] sm:$0xf]
  %v665 = vld [vmem:[%s76 + $0x30] sm:$0xf]
  %v666 = vld [vmem:[%s76 + $0x34] sm:$0xf]
  %v667 = vld [vmem:[%s76 + $0x38] sm:$0xf]
  %v668 = vld [vmem:[%s76 + $0x3c] sm:$0xf]
  %v669 = vld [vmem:[%s76 + $0x40] sm:$0xf]
  %v670 = vld [vmem:[%s76 + $0x44] sm:$0xf]
  %v671 = vld [vmem:[%s76 + $0x48] sm:$0xf]
  %v672 = vld [vmem:[%s76 + $0x4c] sm:$0xf]
  %v673 = vld [vmem:[%s76 + $0x50] sm:$0xf]
  %v674 = vld [vmem:[%s76 + $0x54] sm:$0xf]
  %v675 = vld [vmem:[%s76 + $0x58] sm:$0xf]
  %v676 = vld [vmem:[%s76 + $0x5c] sm:$0xf]
  %v677 = vld [vmem:[%s3] sm:$0x3]
  %v702 = vunpack.c.l.b16 %v653
  %v703 = vunpack.c.l.b16 %v654
  %v704 = vunpack.c.l.b16 %v655
  %v705 = vunpack.c.l.b16 %v656
  %v706 = vunpack.c.l.b16 %v657
  %v707 = vunpack.c.l.b16 %v658
  %v708 = vunpack.c.l.b16 %v659
  %v709 = vunpack.c.l.b16 %v660
  %v710 = vunpack.c.l.b16 %v661
  %v711 = vunpack.c.l.b16 %v662
  %v712 = vunpack.c.l.b16 %v663
  %v713 = vunpack.c.l.b16 %v664
  %v714 = vunpack.c.l.b16 %v665
  %v715 = vunpack.c.l.b16 %v666
  %v716 = vunpack.c.l.b16 %v667
  %v717 = vunpack.c.l.b16 %v668
  %v718 = vunpack.c.l.b16 %v669
  %v719 = vunpack.c.l.b16 %v670
  %v720 = vunpack.c.l.b16 %v671
  %v721 = vunpack.c.l.b16 %v672
  %v722 = vunpack.c.l.b16 %v673
  %v723 = vunpack.c.l.b16 %v674
  %v724 = vunpack.c.l.b16 %v675
  %v725 = vunpack.c.l.b16 %v676
  %v726 = vpack.c.b16 %v703, %v702
  %v727 = vpack.c.b16 %v705, %v704
  %v728 = vpack.c.b16 %v707, %v706
  %v729 = vpack.c.b16 %v709, %v708
  %v730 = vpack.c.b16 %v711, %v710
  %v731 = vpack.c.b16 %v713, %v712
  %v732 = vpack.c.b16 %v715, %v714
  %v733 = vpack.c.b16 %v717, %v716
  %v734 = vpack.c.b16 %v719, %v718
  %v735 = vpack.c.b16 %v721, %v720
  %v736 = vpack.c.b16 %v723, %v722
  %v737 = vpack.c.b16 %v725, %v724
  %vm738 = vcmask 31744
  %v740 = vsel %vm738, %v726, 0
  %v743 = vsel %vm738, %v727, 0
  %v746 = vsel %vm738, %v728, 0
  %v749 = vsel %vm738, %v729, 0
  %v752 = vsel %vm738, %v730, 0
  %v755 = vsel %vm738, %v731, 0
  %v758 = vsel %vm738, %v732, 0
  %v761 = vsel %vm738, %v733, 0
  %v764 = vsel %vm738, %v734, 0
  %v767 = vsel %vm738, %v735, 0
  %v770 = vsel %vm738, %v736, 0
  %v773 = vsel %vm738, %v737, 0
  %vm775 = vcmask 1041408
  %v777 = vsel %vm775, %v677, 0
  %779 = vmatprep.subr.bf16.mxu0 0
  %780 = vmatpush1.bf16.msra.mxu0 0
  %781 = vmatprep.subr.bf16.mxu0 0
  %782 = vmatpush1.bf16.msra.mxu0 0
  %783 = vmatprep.subr.bf16.mxu0 0
  %784 = vmatpush1.bf16.msra.mxu0 0
  %785 = vmatprep.subr.bf16.mxu0 0
  %786 = vmatpush1.bf16.msra.mxu0 0
  %787 = vmatprep.subr.bf16.mxu0 0
  %788 = vmatpush1.bf16.msra.mxu0 0
  %789 = vmatprep.subr.bf16.mxu0 0
  %790 = vmatpush1.bf16.msra.mxu0 0
  %791 = vmatprep.subr.bf16.mxu0 0
  %792 = vmatpush1.bf16.msra.mxu0 0
  %793 = vmatprep.subr.bf16.mxu0 0
  %794 = vmatpush1.bf16.msra.mxu0 %v777
  %795 = vmatprep.subr.bf16.mxu0 0
  %796 = vmatpush2.bf16.msra.mxu0 0
  %797 = vmatprep.subr.bf16.mxu0 0
  %798 = vmatpush2.bf16.msra.mxu0 0
  %799 = vmatprep.subr.bf16.mxu0 0
  %800 = vmatpush2.bf16.msra.mxu0 0
  %801 = vmatprep.subr.bf16.mxu0 0
  %802 = vmatpush2.bf16.msra.mxu0 0
  %803 = vmatprep.subr.bf16.mxu0 0
  %804 = vmatpush2.bf16.msra.mxu0 0
  %805 = vmatprep.subr.bf16.mxu0 0
  %806 = vmatpush2.bf16.msra.mxu0 0
  %807 = vmatprep.subr.bf16.mxu0 0
  %808 = vmatpush2.bf16.msra.mxu0 0
  %809 = vmatprep.subr.bf16.mxu0 0
  %810 = vmatpush2.bf16.msra.mxu0 0
  %811 = vmatprep.mubr.bf16.mxu0 0
  %812 = vmatmul.mubr.bf16.gmra.mxu0 %v740
  %v813 = vpop.f32.mrf.mxu0
  %v814 = vadd.f32 0.0, %v813
  %v815 = vpop.f32.mrf.mxu0
  %v816 = vpop.f32.mrf.mxu0
  %v817 = vadd.f32 0.0, %v816
  %v818 = vpop.f32.mrf.mxu0
  %819 = vmatprep.mubr.bf16.mxu0 0
  %820 = vmatmul.mubr.bf16.gmra.mxu0 %v743
  %v821 = vpop.f32.mrf.mxu0
  %v822 = vadd.f32 0.0, %v821
  %v823 = vpop.f32.mrf.mxu0
  %v824 = vpop.f32.mrf.mxu0
  %v825 = vadd.f32 0.0, %v824
  %v826 = vpop.f32.mrf.mxu0
  %827 = vmatprep.mubr.bf16.mxu0 0
  %828 = vmatmul.mubr.bf16.gmra.mxu0 %v746
  %v829 = vpop.f32.mrf.mxu0
  %v830 = vadd.f32 0.0, %v829
  %v831 = vpop.f32.mrf.mxu0
  %v832 = vpop.f32.mrf.mxu0
  %v833 = vadd.f32 0.0, %v832
  %v834 = vpop.f32.mrf.mxu0
  %835 = vmatprep.mubr.bf16.mxu0 0
  %836 = vmatmul.mubr.bf16.gmra.mxu0 %v749
  %v837 = vpop.f32.mrf.mxu0
  %v838 = vadd.f32 0.0, %v837
  %v839 = vpop.f32.mrf.mxu0
  %v840 = vpop.f32.mrf.mxu0
  %v841 = vadd.f32 0.0, %v840
  %v842 = vpop.f32.mrf.mxu0
  %843 = vmatprep.mubr.bf16.mxu0 0
  %844 = vmatmul.mubr.bf16.gmra.mxu0 %v752
  %v845 = vpop.f32.mrf.mxu0
  %v846 = vadd.f32 0.0, %v845
  %v847 = vpop.f32.mrf.mxu0
  %v848 = vpop.f32.mrf.mxu0
  %v849 = vadd.f32 0.0, %v848
  %v850 = vpop.f32.mrf.mxu0
  %851 = vmatprep.mubr.bf16.mxu0 0
  %852 = vmatmul.mubr.bf16.gmra.mxu0 %v755
  %v853 = vpop.f32.mrf.mxu0
  %v854 = vadd.f32 0.0, %v853
  %v855 = vpop.f32.mrf.mxu0
  %v856 = vpop.f32.mrf.mxu0
  %v857 = vadd.f32 0.0, %v856
  %v858 = vpop.f32.mrf.mxu0
  %859 = vmatprep.mubr.bf16.mxu0 0
  %860 = vmatmul.mubr.bf16.gmra.mxu0 %v758
  %v861 = vpop.f32.mrf.mxu0
  %v862 = vadd.f32 0.0, %v861
  %v863 = vpop.f32.mrf.mxu0
  %v864 = vpop.f32.mrf.mxu0
  %v865 = vadd.f32 0.0, %v864
  %v866 = vpop.f32.mrf.mxu0
  %867 = vmatprep.mubr.bf16.mxu0 0
  %868 = vmatmul.mubr.bf16.gmra.mxu0 %v761
  %v869 = vpop.f32.mrf.mxu0
  %v870 = vadd.f32 0.0, %v869
  %v871 = vpop.f32.mrf.mxu0
  %v872 = vpop.f32.mrf.mxu0
  %v873 = vadd.f32 0.0, %v872
  %v874 = vpop.f32.mrf.mxu0
  %875 = vmatprep.mubr.bf16.mxu0 0
  %876 = vmatmul.mubr.bf16.gmra.mxu0 %v764
  %v877 = vpop.f32.mrf.mxu0
  %v878 = vadd.f32 0.0, %v877
  %v879 = vpop.f32.mrf.mxu0
  %v880 = vpop.f32.mrf.mxu0
  %v881 = vadd.f32 0.0, %v880
  %v882 = vpop.f32.mrf.mxu0
  %883 = vmatprep.mubr.bf16.mxu0 0
  %884 = vmatmul.mubr.bf16.gmra.mxu0 %v767
  %v885 = vpop.f32.mrf.mxu0
  %v886 = vadd.f32 0.0, %v885
  %v887 = vpop.f32.mrf.mxu0
  %v888 = vpop.f32.mrf.mxu0
  %v889 = vadd.f32 0.0, %v888
  %v890 = vpop.f32.mrf.mxu0
  %891 = vmatprep.mubr.bf16.mxu0 0
  %892 = vmatmul.mubr.bf16.gmra.mxu0 %v770
  %v893 = vpop.f32.mrf.mxu0
  %v894 = vadd.f32 0.0, %v893
  %v895 = vpop.f32.mrf.mxu0
  %v896 = vpop.f32.mrf.mxu0
  %v897 = vadd.f32 0.0, %v896
  %v898 = vpop.f32.mrf.mxu0
  %899 = vmatprep.mubr.bf16.mxu0 0
  %900 = vmatmul.mubr.bf16.gmra.mxu0 %v773
  %v901 = vpop.f32.mrf.mxu0
  %v902 = vadd.f32 0.0, %v901
  %v903 = vpop.f32.mrf.mxu0
  %v904 = vpop.f32.mrf.mxu0
  %v905 = vadd.f32 0.0, %v904
  %v906 = vpop.f32.mrf.mxu0
  %907 = vdwg.mxu0
  %v908 = vpack.c.bf16 %v817, %v814
  %v909 = vpack.c.bf16 %v825, %v822
  %v910 = vpack.c.bf16 %v833, %v830
  %v911 = vpack.c.bf16 %v841, %v838
  %v912 = vpack.c.bf16 %v849, %v846
  %v913 = vpack.c.bf16 %v857, %v854
  %v914 = vpack.c.bf16 %v865, %v862
  %v915 = vpack.c.bf16 %v873, %v870
  %v916 = vpack.c.bf16 %v881, %v878
  %v917 = vpack.c.bf16 %v889, %v886
  %v918 = vpack.c.bf16 %v897, %v894
  %v919 = vpack.c.bf16 %v905, %v902
  %v932 = vunpack.c.l.b16 %v908
  %v933 = vunpack.c.h.b16 %v908
  %v934 = vunpack.c.l.b16 %v909
  %v935 = vunpack.c.h.b16 %v909
  %v936 = vunpack.c.l.b16 %v910
  %v937 = vunpack.c.h.b16 %v910
  %v938 = vunpack.c.l.b16 %v911
  %v939 = vunpack.c.h.b16 %v911
  %v940 = vunpack.c.l.b16 %v912
  %v941 = vunpack.c.h.b16 %v912
  %v942 = vunpack.c.l.b16 %v913
  %v943 = vunpack.c.h.b16 %v913
  %v944 = vunpack.c.l.b16 %v914
  %v945 = vunpack.c.h.b16 %v914
  %v946 = vunpack.c.l.b16 %v915
  %v947 = vunpack.c.h.b16 %v915
  %v948 = vunpack.c.l.b16 %v916
  %v949 = vunpack.c.h.b16 %v916
  %v950 = vunpack.c.l.b16 %v917
  %v951 = vunpack.c.h.b16 %v917
  %v952 = vunpack.c.l.b16 %v918
  %v953 = vunpack.c.h.b16 %v918
  %v954 = vunpack.c.l.b16 %v919
  %v955 = vunpack.c.h.b16 %v919
  %v956 = vpack.c.b16 %v932, %v932
  %v957 = vpack.c.b16 %v933, %v933
  %v958 = vpack.c.b16 %v934, %v934
  %v959 = vpack.c.b16 %v935, %v935
  %v960 = vpack.c.b16 %v936, %v936
  %v961 = vpack.c.b16 %v937, %v937
  %v962 = vpack.c.b16 %v938, %v938
  %v963 = vpack.c.b16 %v939, %v939
  %v964 = vpack.c.b16 %v940, %v940
  %v965 = vpack.c.b16 %v941, %v941
  %v966 = vpack.c.b16 %v942, %v942
  %v967 = vpack.c.b16 %v943, %v943
  %v968 = vpack.c.b16 %v944, %v944
  %v969 = vpack.c.b16 %v945, %v945
  %v970 = vpack.c.b16 %v946, %v946
  %v971 = vpack.c.b16 %v947, %v947
  %v972 = vpack.c.b16 %v948, %v948
  %v973 = vpack.c.b16 %v949, %v949
  %v974 = vpack.c.b16 %v950, %v950
  %v975 = vpack.c.b16 %v951, %v951
  %v976 = vpack.c.b16 %v952, %v952
  %v977 = vpack.c.b16 %v953, %v953
  %v978 = vpack.c.b16 %v954, %v954
  %v979 = vpack.c.b16 %v955, %v955
  %1004 = vst.msk [vmem:[%s92] sm:$0xf] %vm491, %v956
  %1005 = vst.msk [vmem:[%s92 + $0x4] sm:$0xf] %vm491, %v957
  %1006 = vst.msk [vmem:[%s92 + $0x8] sm:$0xf] %vm491, %v958
  %1007 = vst.msk [vmem:[%s92 + $0xc] sm:$0xf] %vm491, %v959
  %1008 = vst.msk [vmem:[%s92 + $0x10] sm:$0xf] %vm491, %v960
  %1009 = vst.msk [vmem:[%s92 + $0x14] sm:$0xf] %vm491, %v961
  %1010 = vst.msk [vmem:[%s92 + $0x18] sm:$0xf] %vm491, %v962
  %1011 = vst.msk [vmem:[%s92 + $0x1c] sm:$0xf] %vm491, %v963
  %1012 = vst.msk [vmem:[%s92 + $0x20] sm:$0xf] %vm491, %v964
  %1013 = vst.msk [vmem:[%s92 + $0x24] sm:$0xf] %vm491, %v965
  %1014 = vst.msk [vmem:[%s92 + $0x28] sm:$0xf] %vm491, %v966
  %1015 = vst.msk [vmem:[%s92 + $0x2c] sm:$0xf] %vm491, %v967
  %1016 = vst.msk [vmem:[%s92 + $0x30] sm:$0xf] %vm491, %v968
  %1017 = vst.msk [vmem:[%s92 + $0x34] sm:$0xf] %vm491, %v969
  %1018 = vst.msk [vmem:[%s92 + $0x38] sm:$0xf] %vm491, %v970
  %1019 = vst.msk [vmem:[%s92 + $0x3c] sm:$0xf] %vm491, %v971
  %1020 = vst.msk [vmem:[%s92 + $0x40] sm:$0xf] %vm491, %v972
  %1021 = vst.msk [vmem:[%s92 + $0x44] sm:$0xf] %vm491, %v973
  %1022 = vst.msk [vmem:[%s92 + $0x48] sm:$0xf] %vm491, %v974
  %1023 = vst.msk [vmem:[%s92 + $0x4c] sm:$0xf] %vm491, %v975
  %1024 = vst.msk [vmem:[%s92 + $0x50] sm:$0xf] %vm491, %v976
  %1025 = vst.msk [vmem:[%s92 + $0x54] sm:$0xf] %vm491, %v977
  %1026 = vst.msk [vmem:[%s92 + $0x58] sm:$0xf] %vm491, %v978
  %1027 = vst.msk [vmem:[%s92 + $0x5c] sm:$0xf] %vm491, %v979
  %v1028 = vld [vmem:[%s8] sm:$0xff]
  %v1029 = vsel %vm517, %v814, 0.0
  %v1030 = vsel %vm517, %v817, 0.0
  %v1031 = vadd.f32 %v1029, %v1030
  %v1032 = vsel %vm517, %v822, 0.0
  %v1033 = vadd.f32 %v1031, %v1032
  %v1034 = vsel %vm517, %v825, 0.0
  %v1035 = vadd.f32 %v1033, %v1034
  %v1036 = vsel %vm517, %v830, 0.0
  %v1037 = vadd.f32 %v1035, %v1036
  %v1038 = vsel %vm517, %v833, 0.0
  %v1039 = vadd.f32 %v1037, %v1038
  %v1040 = vsel %vm517, %v838, 0.0
  %v1041 = vadd.f32 %v1039, %v1040
  %v1042 = vsel %vm517, %v841, 0.0
  %v1043 = vadd.f32 %v1041, %v1042
  %v1044 = vsel %vm517, %v846, 0.0
  %v1045 = vadd.f32 %v1043, %v1044
  %v1046 = vsel %vm517, %v849, 0.0
  %v1047 = vadd.f32 %v1045, %v1046
  %v1048 = vsel %vm517, %v854, 0.0
  %v1049 = vadd.f32 %v1047, %v1048
  %v1050 = vsel %vm517, %v857, 0.0
  %v1051 = vadd.f32 %v1049, %v1050
  %v1052 = vsel %vm517, %v862, 0.0
  %v1053 = vadd.f32 %v1051, %v1052
  %v1054 = vsel %vm517, %v865, 0.0
  %v1055 = vadd.f32 %v1053, %v1054
  %v1056 = vsel %vm517, %v870, 0.0
  %v1057 = vadd.f32 %v1055, %v1056
  %v1058 = vsel %vm517, %v873, 0.0
  %v1059 = vadd.f32 %v1057, %v1058
  %v1060 = vsel %vm517, %v878, 0.0
  %v1061 = vadd.f32 %v1059, %v1060
  %v1062 = vsel %vm517, %v881, 0.0
  %v1063 = vadd.f32 %v1061, %v1062
  %v1064 = vsel %vm517, %v886, 0.0
  %v1065 = vadd.f32 %v1063, %v1064
  %v1066 = vsel %vm517, %v889, 0.0
  %v1067 = vadd.f32 %v1065, %v1066
  %v1068 = vsel %vm517, %v894, 0.0
  %v1069 = vadd.f32 %v1067, %v1068
  %v1070 = vsel %vm517, %v897, 0.0
  %v1071 = vadd.f32 %v1069, %v1070
  %v1072 = vsel %vm517, %v902, 0.0
  %v1073 = vadd.f32 %v1071, %v1072
  %v1074 = vsel %vm517, %v905, 0.0
  %v1075 = vadd.f32 %v1073, %v1074
  %v1076 = vrot.slane %v1075, 4
  %v1077 = vadd.f32 %v1075, %v1076
  %v1078 = vrot.slane %v1077, 2
  %v1079 = vadd.f32 %v1077, %v1078
  %v1080 = vrot.slane %v1079, 1
  %v1081 = vadd.f32 %v1079, %v1080
  %v1082 = vadd.f32 %v1028, %v1081
  %1083 = vst.msk [vmem:[%s8] sm:$0xff] %vm517, %v1082
  %v1084 = vld [vmem:[%s9] sm:$0xff]
  %v1085 = vmul.f32 %v814, %v814
  %v1086 = vmul.f32 %v817, %v817
  %v1087 = vmul.f32 %v822, %v822
  %v1088 = vmul.f32 %v825, %v825
  %v1089 = vmul.f32 %v830, %v830
  %v1090 = vmul.f32 %v833, %v833
  %v1091 = vmul.f32 %v838, %v838
  %v1092 = vmul.f32 %v841, %v841
  %v1093 = vmul.f32 %v846, %v846
  %v1094 = vmul.f32 %v849, %v849
  %v1095 = vmul.f32 %v854, %v854
  %v1096 = vmul.f32 %v857, %v857
  %v1097 = vmul.f32 %v862, %v862
  %v1098 = vmul.f32 %v865, %v865
  %v1099 = vmul.f32 %v870, %v870
  %v1100 = vmul.f32 %v873, %v873
  %v1101 = vmul.f32 %v878, %v878
  %v1102 = vmul.f32 %v881, %v881
  %v1103 = vmul.f32 %v886, %v886
  %v1104 = vmul.f32 %v889, %v889
  %v1105 = vmul.f32 %v894, %v894
  %v1106 = vmul.f32 %v897, %v897
  %v1107 = vmul.f32 %v902, %v902
  %v1108 = vmul.f32 %v905, %v905
  %v1109 = vsel %vm517, %v1085, 0.0
  %v1110 = vsel %vm517, %v1086, 0.0
  %v1111 = vadd.f32 %v1109, %v1110
  %v1112 = vsel %vm517, %v1087, 0.0
  %v1113 = vadd.f32 %v1111, %v1112
  %v1114 = vsel %vm517, %v1088, 0.0
  %v1115 = vadd.f32 %v1113, %v1114
  %v1116 = vsel %vm517, %v1089, 0.0
  %v1117 = vadd.f32 %v1115, %v1116
  %v1118 = vsel %vm517, %v1090, 0.0
  %v1119 = vadd.f32 %v1117, %v1118
  %v1120 = vsel %vm517, %v1091, 0.0
  %v1121 = vadd.f32 %v1119, %v1120
  %v1122 = vsel %vm517, %v1092, 0.0
  %v1123 = vadd.f32 %v1121, %v1122
  %v1124 = vsel %vm517, %v1093, 0.0
  %v1125 = vadd.f32 %v1123, %v1124
  %v1126 = vsel %vm517, %v1094, 0.0
  %v1127 = vadd.f32 %v1125, %v1126
  %v1128 = vsel %vm517, %v1095, 0.0
  %v1129 = vadd.f32 %v1127, %v1128
  %v1130 = vsel %vm517, %v1096, 0.0
  %v1131 = vadd.f32 %v1129, %v1130
  %v1132 = vsel %vm517, %v1097, 0.0
  %v1133 = vadd.f32 %v1131, %v1132
  %v1134 = vsel %vm517, %v1098, 0.0
  %v1135 = vadd.f32 %v1133, %v1134
  %v1136 = vsel %vm517, %v1099, 0.0
  %v1137 = vadd.f32 %v1135, %v1136
  %v1138 = vsel %vm517, %v1100, 0.0
  %v1139 = vadd.f32 %v1137, %v1138
  %v1140 = vsel %vm517, %v1101, 0.0
  %v1141 = vadd.f32 %v1139, %v1140
  %v1142 = vsel %vm517, %v1102, 0.0
  %v1143 = vadd.f32 %v1141, %v1142
  %v1144 = vsel %vm517, %v1103, 0.0
  %v1145 = vadd.f32 %v1143, %v1144
  %v1146 = vsel %vm517, %v1104, 0.0
  %v1147 = vadd.f32 %v1145, %v1146
  %v1148 = vsel %vm517, %v1105, 0.0
  %v1149 = vadd.f32 %v1147, %v1148
  %v1150 = vsel %vm517, %v1106, 0.0
  %v1151 = vadd.f32 %v1149, %v1150
  %v1152 = vsel %vm517, %v1107, 0.0
  %v1153 = vadd.f32 %v1151, %v1152
  %v1154 = vsel %vm517, %v1108, 0.0
  %v1155 = vadd.f32 %v1153, %v1154
  %v1156 = vrot.slane %v1155, 4
  %v1157 = vadd.f32 %v1155, %v1156
  %v1158 = vrot.slane %v1157, 2
  %v1159 = vadd.f32 %v1157, %v1158
  %v1160 = vrot.slane %v1159, 1
  %v1161 = vadd.f32 %v1159, %v1160
  %v1162 = vadd.f32 %v1084, %v1161
  %1163 = vst.msk [vmem:[%s9] sm:$0xff] %vm517, %v1162
  %s1164 = sadd.s32 0, 0
  %s1165 = smul.u32 24, %s1164
  %p1166 = scmp.lt.s32.totalorder %s1165, 23
  %s1167 = scalar_select %p1166, %s1165, 23
  %s1168 = smul.addr %s1167, 4
  %s1169 = scalar_lea.vmem %s4, %s1168
  %s1170 = sadd.s32 0, 0
  %s1171 = smul.u32 24, %s1170
  %p1172 = scmp.lt.s32.totalorder %s1171, 23
  %s1173 = scalar_select %p1172, %s1171, 23
  %s1174 = smul.addr %s1173, 4
  %s1175 = scalar_lea.vmem %s7, %s1174
  // Predicated region
  $region22: #{residual_block_forward.6} parent=0 // pred_check
    _
  $region23: #{residual_block_forward.6} parent=0 // pred_check_branch
    %1177 = sbr.rel (0) target = $region25
  $region24: #{residual_block_forward.6} parent=0 // pred_region
    %s1178 = sadd.s32 0, 0
    %s1179 = smul.u32 24, %s1178
  $region25: #{residual_block_forward.6} parent=0 // pred_fallthru
    _
  // Predicated region
  $region26: #{residual_block_forward.6} parent=0 // pred_check
    _
  $region27: #{residual_block_forward.6} parent=0 // pred_check_branch
    %1181 = sbr.rel (0) target = $region29
  $region28: #{residual_block_forward.6} parent=0 // pred_region
    _
  $region29: #{residual_block_forward.6} parent=0 // pred_fallthru
    _
  // Predicated region
  $region30: #{residual_block_forward.6} parent=0 // pred_check
    _
  $region31: #{residual_block_forward.6} parent=0 // pred_check_branch
    %1183 = sbr.rel (0) target = $region33
  $region32: #{residual_block_forward.6} parent=0 // pred_region
    _
  $region33: #{residual_block_forward.6} parent=0 // pred_fallthru
    _
  // Predicated region
  $region34: #{residual_block_forward.6} parent=0 // pred_check
    _
  $region35: #{residual_block_forward.6} parent=0 // pred_check_branch
    %1185 = sbr.rel (0) target = $region37
  $region36: #{residual_block_forward.6} parent=0 // pred_region
    %s1186 = sadd.s32 0, 0
    %s1187 = smul.u32 24, %s1186
  $region37: #{residual_block_forward.6} parent=0 // pred_fallthru
    _
  // Predicated region
  $region38: #{residual_block_forward.6} parent=0 // pred_check
    _
  $region39: #{residual_block_forward.6} parent=0 // pred_check_branch
    %1189 = sbr.rel (0) target = $region41
  $region40: #{residual_block_forward.6} parent=0 // pred_region
    _
  $region41: #{residual_block_forward.6} parent=0 // pred_fallthru
    _
  // Predicated region
  $region42: #{residual_block_forward.6} parent=0 // pred_check
    _
  $region43: #{residual_block_forward.6} parent=0 // pred_check_branch
    %1191 = sbr.rel (0) target = $region45
  $region44: #{residual_block_forward.6} parent=0 // pred_region
    _
  $region45: #{residual_block_forward.6} parent=0 // pred_fallthru
    _
  // Predicated region
  $region46: #{residual_block_forward.6} parent=0 // pred_check
    _
  $region47: #{residual_block_forward.6} parent=0 // pred_check_branch
    %1193 = sbr.rel (0) target = $region49
  $region48: #{residual_block_forward.6} parent=0 // pred_region
    %s1194 = sadd.s32 0, 0
    %s1195 = smul.u32 24, %s1194
    %p1196 = scmp.lt.s32.totalorder %s1195, 23
    %s1197 = scalar_select %p1196, %s1195, 23
    %s1198 = smul.addr %s1197, 4
    %s1199 = scalar_lea.vmem %s4, %s1198
  $region49: #{residual_block_forward.6} parent=0 // pred_fallthru
    _
  // Predicated region
  $region50: #{residual_block_forward.6} parent=0 // pred_check
    _
  $region51: #{residual_block_forward.6} parent=0 // pred_check_branch
    %1201 = sbr.rel (0) target = $region53
  $region52: #{residual_block_forward.6} parent=0 // pred_region
    _
  $region53: #{residual_block_forward.6} parent=0 // pred_fallthru
    _
  // Predicated region
  $region54: #{residual_block_forward.6} parent=0 // pred_check
    _
  $region55: #{residual_block_forward.6} parent=0 // pred_check_branch
    %1203 = sbr.rel (0) target = $region57
  $region56: #{residual_block_forward.6} parent=0 // pred_region
    _
  $region57: #{residual_block_forward.6} parent=0 // pred_fallthru
    _
  // Predicated region
  $region58: #{residual_block_forward.6} parent=0 // pred_check
    _
  $region59: #{residual_block_forward.6} parent=0 // pred_check_branch
    %1205 = sbr.rel (0) target = $region61
  $region60: #{residual_block_forward.6} parent=0 // pred_region
    %s1206 = sadd.s32 0, 0
    %s1207 = smul.u32 24, %s1206
    %p1208 = scmp.lt.s32.totalorder %s1207, 23
    %s1209 = scalar_select %p1208, %s1207, 23
    %s1210 = smul.addr %s1209, 4
    %s1211 = scalar_lea.vmem %s7, %s1210
  $region61: #{residual_block_forward.6} parent=0 // pred_fallthru
    _
  // Predicated region
  $region62: #{residual_block_forward.6} parent=0 // pred_check
    _
  $region63: #{residual_block_forward.6} parent=0 // pred_check_branch
    %1213 = sbr.rel (0) target = $region65
  $region64: #{residual_block_forward.6} parent=0 // pred_region
    _
  $region65: #{residual_block_forward.6} parent=0 // pred_fallthru
    _
  // Predicated region
  $region66: #{residual_block_forward.6} parent=0 // pred_check
    _
  $region67: #{residual_block_forward.6} parent=0 // pred_check_branch
    %1215 = sbr.rel (0) target = $region69
  $region68: #{residual_block_forward.6} parent=0 // pred_region
    _
  $region69: #{residual_block_forward.6} parent=0 // pred_fallthru
    _

</llo_original>
